<compile_context>
chip_gen: v7x
topology: tpu7x:2x2x1
jax: 0.10.0
libtpu: 0.0.40
codegen_flags: <defaults>
</compile_context>

<pallas_src>
import functools
import math

import jax
import jax.numpy as jnp
from jax.experimental import pallas as pl
from jax.experimental.pallas import tpu as pltpu

_INV_SQRT2 = 1.0 / math.sqrt(2.0)


def _gelu_exact(h):
    # Exact (erf) GELU -- matches torch.nn.GELU default.
    # TODO(synk): if a bundle dump shows the VALU (not the MXU) is the binding
    #             unit, do this math in bf16 on v6e/v7x or switch to tanh-approx
    #             GELU (EUP slot) -- accuracy caveat vs torch's exact erf GELU.
    return 0.5 * h * (1.0 + jax.lax.erf(h * _INV_SQRT2))


def _ff_kernel_resident(x_ref, w1_ref, b1_ref, w2_ref, b2_ref, o_ref, *, precision):
    # x_ref: (TM, D) tile of flattened tokens; weights fully resident in VMEM.
    x = x_ref[...]
    if x.dtype != w1_ref.dtype:
        x = x.astype(w1_ref.dtype)          # bf16 weights stay on the native MXU path
    h = jnp.dot(x, w1_ref[...], preferred_element_type=jnp.float32,
                precision=precision)
    h = _gelu_exact(h + b1_ref[...].astype(jnp.float32))
    # Dropout(p=0.0) is the identity (and eval mode) -> nothing to do.
    # TODO(synk): for nonzero dropout build a mask with pltpu.prng_seed +
    #             pltpu.prng_random_bits here.
    out = jnp.dot(h.astype(w2_ref.dtype), w2_ref[...],
                  preferred_element_type=jnp.float32, precision=precision)
    o_ref[...] = (out + b2_ref[...].astype(jnp.float32)).astype(o_ref.dtype)


def _ff_kernel_htiled(x_ref, w1_ref, b1_ref, w2_ref, b2_ref, o_ref, acc_ref, *, precision):
    # Grid = (row tiles, hidden tiles).  GELU is elementwise on the hidden dim,
    # so the MLP decomposes exactly over H-slices into an fp32 accumulator.
    k = pl.program_id(1)

    @pl.when(k == 0)
    def _init():
        acc_ref[...] = jnp.zeros_like(acc_ref)

    x = x_ref[...]
    if x.dtype != w1_ref.dtype:
        x = x.astype(w1_ref.dtype)
    h = jnp.dot(x, w1_ref[...], preferred_element_type=jnp.float32,
                precision=precision)
    h = _gelu_exact(h + b1_ref[...].astype(jnp.float32))
    acc_ref[...] += jnp.dot(h.astype(w2_ref.dtype), w2_ref[...],
                            preferred_element_type=jnp.float32, precision=precision)

    @pl.when(k == pl.num_programs(1) - 1)
    def _finalize():
        o_ref[...] = (acc_ref[...] + b2_ref[...].astype(jnp.float32)).astype(o_ref.dtype)


def _round_up(v, m):
    return ((v + m - 1) // m) * m


def _physical_vmem_bytes():
    try:
        return int(pltpu.get_tpu_info().vmem_capacity_bytes)
    except Exception:
        pass
    try:
        kind = jax.devices()[0].device_kind.lower()
        if "v5" in kind or "v6" in kind:
            return 128 << 20
    except Exception:
        pass
    return 64 << 20  # conservative (v7x-sized) default


def feed_forward(x, w1, b1, w2, b2, *, precision=None):
    """Fused ViT MLP.  x: (..., D) -> (..., D)."""
    *lead, D = x.shape
    H = w1.shape[1]
    N = int(math.prod(lead)) if lead else 1

    if precision is None:
        # Pin the MXU decomposition explicitly: fp32 inputs use the fp32-accurate
        # multi-pass path (matches the fp32 torch reference); bf16 runs native.
        precision = (jax.lax.Precision.HIGHEST
                     if x.dtype == jnp.float32 else jax.lax.Precision.DEFAULT)

    # No host-side pad: Pallas masks the ragged final row block.
    x2d = x.reshape(N, D)
    b1_2d = b1.reshape(1, H)
    b2_2d = b2.reshape(1, D)

    x_bytes = jnp.dtype(x.dtype).itemsize
    w_bytes = jnp.dtype(w1.dtype).itemsize

    phys_vmem = _physical_vmem_bytes()
    budget = phys_vmem - (16 << 20)           # leave compiler-internal-scratch headroom

    def resident_bytes(tm):
        return (4 * tm * D * x_bytes          # x + out tiles, double-buffered
                + 2 * D * H * w_bytes         # W1 + W2, single-buffered (Buffered(1))
                + (H + D) * w_bytes           # biases
                + 4 * tm * H * 4)             # fp32 hidden + cast + erf temporaries

    def htiled_bytes(tm, th):
        return (4 * tm * D * x_bytes          # x + out tiles, double-buffered
                + 4 * D * th * w_bytes        # W1/W2 H-slices, double-buffered
                + 2 * (th + D) * w_bytes
                + tm * D * 4                  # fp32 accumulator scratch
                + 4 * tm * th * 4)

    row_cap = _round_up(max(N, 1), 8)
    row_cands = sorted({min(t, row_cap) for t in (512, 256, 128)}, reverse=True)

    tm = None
    for cand in row_cands:
        if resident_bytes(cand) <= budget:
            tm = cand
            break

    cost = pl.CostEstimate(
        flops=4 * N * D * H,                  # two matmuls: 2*N*D*H each
        transcendentals=N * H,                # erf
        bytes_accessed=2 * N * D * x_bytes + (2 * D * H + H + D) * w_bytes,
    )

    def _weight_spec(shape, index_map, single_buffer):
        if single_buffer:
            # Constant index_map -> one DMA suffices; don't waste VMEM on a 2nd buffer.
            return pl.BlockSpec(shape, index_map, pipeline_mode=pl.Buffered(1))
        return pl.BlockSpec(shape, index_map)

    if tm is not None:
        # ---------------- resident-weights path ----------------
        def run(single_buffer_weights):
            need = resident_bytes(tm)
            if not single_buffer_weights:
                need += 2 * D * H * w_bytes
            vmem_limit = int(min(max(need + (8 << 20), 32 << 20),
                                 phys_vmem - (16 << 20)))
            return pl.pallas_call(
                functools.partial(_ff_kernel_resident, precision=precision),
                out_shape=jax.ShapeDtypeStruct((N, D), x.dtype),
                grid_spec=pltpu.PrefetchScalarGridSpec(
                    num_scalar_prefetch=0,
                    grid=(pl.cdiv(N, tm),),
                    in_specs=[
                        pl.BlockSpec((tm, D), lambda i: (i, 0)),                        # x tile
                        _weight_spec((D, H), lambda i: (0, 0), single_buffer_weights),  # W1
                        _weight_spec((1, H), lambda i: (0, 0), single_buffer_weights),  # b1
                        _weight_spec((H, D), lambda i: (0, 0), single_buffer_weights),  # W2
                        _weight_spec((1, D), lambda i: (0, 0), single_buffer_weights),  # b2
                    ],
                    out_specs=pl.BlockSpec((tm, D), lambda i: (i, 0)),
                ),
                compiler_params=pltpu.CompilerParams(
                    # TODO(synk): confirm on xprof that this axis shards across both
                    #             v7x TensorCores; if not, try pltpu.CORE_PARALLEL.
                    dimension_semantics=("parallel",),
                    vmem_limit_bytes=vmem_limit,
                ),
                cost_estimate=cost,
            )(x2d, w1, b1_2d, w2, b2_2d)

        try:
            out2d = run(single_buffer_weights=True)
        except Exception:
            # Some jax versions reject single-buffered BlockSpecs; keep running
            # with the default double-buffered resident weights.
            out2d = run(single_buffer_weights=False)
    else:
        # ---------------- H-tiled accumulator path ----------------
        # Weights too large to stay resident (e.g. ViT-L/H fp32 on v7x's 64 MiB):
        # stream H-slices of W1/W2 and accumulate into an fp32 VMEM scratch.
        th = next((t for t in (512, 256, 128) if H % t == 0), None)
        if th is None:
            # TODO(synk): pad H to a 128-multiple for odd hidden sizes; degenerate
            #             to a single H block for now.
            th = H
        tm_h = 8
        for cand in (256, 128, 64, 32, 16, 8):
            cand = min(cand, row_cap)
            if htiled_bytes(cand, th) <= budget:
                tm_h = cand
                break
        vmem_limit = int(min(max(htiled_bytes(tm_h, th) + (8 << 20), 32 << 20),
                             phys_vmem - (16 << 20)))
        out2d = pl.pallas_call(
            functools.partial(_ff_kernel_htiled, precision=precision),
            out_shape=jax.ShapeDtypeStruct((N, D), x.dtype),
            grid_spec=pltpu.PrefetchScalarGridSpec(
                num_scalar_prefetch=0,
                grid=(pl.cdiv(N, tm_h), pl.cdiv(H, th)),
                in_specs=[
                    pl.BlockSpec((tm_h, D), lambda i, k: (i, 0)),   # x tile (resident over k)
                    pl.BlockSpec((D, th), lambda i, k: (0, k)),     # W1 H-slice
                    pl.BlockSpec((1, th), lambda i, k: (0, k)),     # b1 H-slice
                    pl.BlockSpec((th, D), lambda i, k: (k, 0)),     # W2 H-slice
                    pl.BlockSpec((1, D), lambda i, k: (0, 0)),      # b2
                ],
                out_specs=pl.BlockSpec((tm_h, D), lambda i, k: (i, 0)),
                scratch_shapes=[pltpu.VMEM((tm_h, D), jnp.float32)],
            ),
            compiler_params=pltpu.CompilerParams(
                dimension_semantics=("parallel", "arbitrary"),
                vmem_limit_bytes=vmem_limit,
            ),
            cost_estimate=cost,
        )(x2d, w1, b1_2d, w2, b2_2d)

    return out2d.reshape(*lead, D)


def _reference(x, w1, b1, w2, b2):
    # fp32 ground truth (matches torch's fp32 Linear/GELU); force accurate matmuls.
    with jax.default_matmul_precision("highest"):
        h = x @ w1 + b1
        h = 0.5 * h * (1.0 + jax.lax.erf(h / jnp.sqrt(2.0)))
        return h @ w2 + b2


if __name__ == "__main__":
    # Small shapes consistent with a ViT FeedForward block.
    B, S, D, H = 2, 8, 32, 64

    key = jax.random.PRNGKey(0)
    kx, kw1, kb1, kw2, kb2 = jax.random.split(key, 5)

    x = jax.random.normal(kx, (B, S, D), dtype=jnp.float32)

    # Deterministic PyTorch-style Linear init: U(-1/sqrt(fan_in), 1/sqrt(fan_in)).
    lim1 = 1.0 / math.sqrt(D)
    w1 = jax.random.uniform(kw1, (D, H), minval=-lim1, maxval=lim1, dtype=jnp.float32)
    b1 = jax.random.uniform(kb1, (H,), minval=-lim1, maxval=lim1, dtype=jnp.float32)
    lim2 = 1.0 / math.sqrt(H)
    w2 = jax.random.uniform(kw2, (H, D), minval=-lim2, maxval=lim2, dtype=jnp.float32)
    b2 = jax.random.uniform(kb2, (D,), minval=-lim2, maxval=lim2, dtype=jnp.float32)

    out = jax.block_until_ready(feed_forward(x, w1, b1, w2, b2))

    ref = _reference(x, w1, b1, w2, b2)
    assert out.shape == (B, S, D)
    assert jnp.allclose(out, ref, atol=1e-5, rtol=1e-5), \
        float(jnp.max(jnp.abs(out - ref)))

    print("KERNEL_OK")
</pallas_src>

<mosaic_0001>
module attributes {stable_mosaic.version = 11 : i64} {
  func.func @_ff_kernel_resident(%arg0: i32, %arg1: memref<16x32xf32, #tpu.memory_space<vmem>>, %arg2: memref<32x64xf32, #tpu.memory_space<vmem>>, %arg3: memref<1x64xf32, #tpu.memory_space<vmem>>, %arg4: memref<64x32xf32, #tpu.memory_space<vmem>>, %arg5: memref<1x32xf32, #tpu.memory_space<vmem>>, %arg6: memref<16x32xf32, #tpu.memory_space<vmem>>) attributes {dimension_semantics = [#tpu.dimension_semantics<parallel>], iteration_bounds = array<i64: 1>, scalar_prefetch = 0 : i64, scratch_operands = 0 : i64, tpu.core_type = #tpu.core_type<tc>, window_params = [{transform_indices = @transform_0, window_bounds = array<i64: 16, 32>}, {pipeline_mode = #tpu.pipeline_mode<synchronous>, transform_indices = @transform_1, window_bounds = array<i64: 32, 64>}, {pipeline_mode = #tpu.pipeline_mode<synchronous>, transform_indices = @transform_2, window_bounds = array<i64: 1, 64>}, {pipeline_mode = #tpu.pipeline_mode<synchronous>, transform_indices = @transform_3, window_bounds = array<i64: 64, 32>}, {pipeline_mode = #tpu.pipeline_mode<synchronous>, transform_indices = @transform_4, window_bounds = array<i64: 1, 32>}, {transform_indices = @transform_5, window_bounds = array<i64: 16, 32>}]} {
    %c0 = arith.constant 0 : index
    %c0_0 = arith.constant 0 : index
    %0 = vector.load %arg1[%c0, %c0_0] : memref<16x32xf32, #tpu.memory_space<vmem>>, vector<16x32xf32>
    %c0_1 = arith.constant 0 : index
    %c0_2 = arith.constant 0 : index
    %1 = vector.load %arg2[%c0_1, %c0_2] : memref<32x64xf32, #tpu.memory_space<vmem>>, vector<32x64xf32>
    %cst = arith.constant dense<0.000000e+00> : vector<16x64xf32>
    %2 = tpu.matmul %0, %1, %cst {dimension_numbers = #tpu.dot_dimension_numbers<[1], [0], [0], [1], [0, 0, 1, 1], [], []>, precision = #tpu.contract_precision<fp32>} : vector<16x32xf32>, vector<32x64xf32>, vector<16x64xf32> -> vector<16x64xf32>
    %c0_3 = arith.constant 0 : index
    %c0_4 = arith.constant 0 : index
    %3 = vector.load %arg3[%c0_3, %c0_4] : memref<1x64xf32, #tpu.memory_space<vmem>>, vector<1x64xf32>
    %4 = vector.broadcast %3 : vector<1x64xf32> to vector<16x64xf32>
    %5 = arith.addf %2, %4 : vector<16x64xf32>
    %cst_5 = arith.constant 5.000000e-01 : f32
    %6 = vector.broadcast %cst_5 : f32 to vector<16x64xf32>
    %7 = arith.mulf %6, %5 : vector<16x64xf32>
    %cst_6 = arith.constant 0.707106769 : f32
    %8 = vector.broadcast %cst_6 : f32 to vector<16x64xf32>
    %9 = arith.mulf %5, %8 : vector<16x64xf32>
    %10 = math.erf %9 : vector<16x64xf32>
    %cst_7 = arith.constant 1.000000e+00 : f32
    %11 = vector.broadcast %cst_7 : f32 to vector<16x64xf32>
    %12 = arith.addf %11, %10 : vector<16x64xf32>
    %13 = arith.mulf %7, %12 : vector<16x64xf32>
    %c0_8 = arith.constant 0 : index
    %c0_9 = arith.constant 0 : index
    %14 = vector.load %arg4[%c0_8, %c0_9] : memref<64x32xf32, #tpu.memory_space<vmem>>, vector<64x32xf32>
    %cst_10 = arith.constant dense<0.000000e+00> : vector<16x32xf32>
    %15 = tpu.matmul %13, %14, %cst_10 {dimension_numbers = #tpu.dot_dimension_numbers<[1], [0], [0], [1], [0, 0, 1, 1], [], []>, precision = #tpu.contract_precision<fp32>} : vector<16x64xf32>, vector<64x32xf32>, vector<16x32xf32> -> vector<16x32xf32>
    %c0_11 = arith.constant 0 : index
    %c0_12 = arith.constant 0 : index
    %16 = vector.load %arg5[%c0_11, %c0_12] : memref<1x32xf32, #tpu.memory_space<vmem>>, vector<1x32xf32>
    %17 = vector.broadcast %16 : vector<1x32xf32> to vector<16x32xf32>
    %18 = arith.addf %15, %17 : vector<16x32xf32>
    %c0_13 = arith.constant 0 : index
    %c0_14 = arith.constant 0 : index
    %19 = vector.load %arg6[%c0_13, %c0_14] : memref<16x32xf32, #tpu.memory_space<vmem>>, vector<16x32xf32>
    tpu.vector_store %arg6[%c0_13, %c0_14], %18 {strides = array<i32>} : memref<16x32xf32, #tpu.memory_space<vmem>>, vector<16x32xf32>,
    return
  }
  func.func @transform_0(%arg0: i32) -> (i32, i32) {
    %c0_i32 = arith.constant 0 : i32
    %c0_i32_0 = arith.constant 0 : i32
    return %arg0, %c0_i32 : i32, i32
  }
  func.func @transform_1(%arg0: i32) -> (i32, i32) {
    %c0_i32 = arith.constant 0 : i32
    %c0_i32_0 = arith.constant 0 : i32
    %c0_i32_1 = arith.constant 0 : i32
    return %c0_i32, %c0_i32_0 : i32, i32
  }
  func.func @transform_2(%arg0: i32) -> (i32, i32) {
    %c0_i32 = arith.constant 0 : i32
    %c0_i32_0 = arith.constant 0 : i32
    %c0_i32_1 = arith.constant 0 : i32
    return %c0_i32, %c0_i32_0 : i32, i32
  }
  func.func @transform_3(%arg0: i32) -> (i32, i32) {
    %c0_i32 = arith.constant 0 : i32
    %c0_i32_0 = arith.constant 0 : i32
    %c0_i32_1 = arith.constant 0 : i32
    return %c0_i32, %c0_i32_0 : i32, i32
  }
  func.func @transform_4(%arg0: i32) -> (i32, i32) {
    %c0_i32 = arith.constant 0 : i32
    %c0_i32_0 = arith.constant 0 : i32
    %c0_i32_1 = arith.constant 0 : i32
    return %c0_i32, %c0_i32_0 : i32, i32
  }
  func.func @transform_5(%arg0: i32) -> (i32, i32) {
    %c0_i32 = arith.constant 0 : i32
    %c0_i32_0 = arith.constant 0 : i32
    return %arg0, %c0_i32 : i32, i32
  }
}

module attributes {stable_mosaic.version = 11 : i64} {
  func.func @_ff_kernel_resident(%arg0: i32, %arg1: memref<16x32xf32, #tpu.memory_space<vmem>>, %arg2: memref<32x64xf32, #tpu.memory_space<vmem>>, %arg3: memref<1x64xf32, #tpu.memory_space<vmem>>, %arg4: memref<64x32xf32, #tpu.memory_space<vmem>>, %arg5: memref<1x32xf32, #tpu.memory_space<vmem>>, %arg6: memref<16x32xf32, #tpu.memory_space<vmem>>) attributes {dimension_semantics = [#tpu.dimension_semantics<parallel>], iteration_bounds = array<i64: 1>, scalar_prefetch = 0 : i64, scratch_operands = 0 : i64, tpu.core_type = #tpu.core_type<tc>, window_params = [{transform_indices = @transform_0, window_bounds = array<i64: 16, 32>}, {pipeline_mode = #tpu.pipeline_mode<synchronous>, transform_indices = @transform_1, window_bounds = array<i64: 32, 64>}, {pipeline_mode = #tpu.pipeline_mode<synchronous>, transform_indices = @transform_2, window_bounds = array<i64: 1, 64>}, {pipeline_mode = #tpu.pipeline_mode<synchronous>, transform_indices = @transform_3, window_bounds = array<i64: 64, 32>}, {pipeline_mode = #tpu.pipeline_mode<synchronous>, transform_indices = @transform_4, window_bounds = array<i64: 1, 32>}, {transform_indices = @transform_5, window_bounds = array<i64: 16, 32>}]} {
    %c0 = arith.constant 0 : index
    %c0_0 = arith.constant 0 : index
    %0 = vector.load %arg1[%c0, %c0_0] : memref<16x32xf32, #tpu.memory_space<vmem>>, vector<16x32xf32>
    %c0_1 = arith.constant 0 : index
    %c0_2 = arith.constant 0 : index
    %1 = vector.load %arg2[%c0_1, %c0_2] : memref<32x64xf32, #tpu.memory_space<vmem>>, vector<32x64xf32>
    %cst = arith.constant dense<0.000000e+00> : vector<16x64xf32>
    %2 = tpu.matmul %0, %1, %cst {dimension_numbers = #tpu.dot_dimension_numbers<[1], [0], [0], [1], [0, 0, 1, 1], [], []>, precision = #tpu.contract_precision<fp32>} : vector<16x32xf32>, vector<32x64xf32>, vector<16x64xf32> -> vector<16x64xf32>
    %c0_3 = arith.constant 0 : index
    %c0_4 = arith.constant 0 : index
    %3 = vector.load %arg3[%c0_3, %c0_4] : memref<1x64xf32, #tpu.memory_space<vmem>>, vector<1x64xf32>
    %4 = vector.broadcast %3 : vector<1x64xf32> to vector<16x64xf32>
    %5 = arith.addf %2, %4 : vector<16x64xf32>
    %cst_5 = arith.constant 5.000000e-01 : f32
    %6 = vector.broadcast %cst_5 : f32 to vector<16x64xf32>
    %7 = arith.mulf %6, %5 : vector<16x64xf32>
    %cst_6 = arith.constant 0.707106769 : f32
    %8 = vector.broadcast %cst_6 : f32 to vector<16x64xf32>
    %9 = arith.mulf %5, %8 : vector<16x64xf32>
    %10 = math.erf %9 : vector<16x64xf32>
    %cst_7 = arith.constant 1.000000e+00 : f32
    %11 = vector.broadcast %cst_7 : f32 to vector<16x64xf32>
    %12 = arith.addf %11, %10 : vector<16x64xf32>
    %13 = arith.mulf %7, %12 : vector<16x64xf32>
    %c0_8 = arith.constant 0 : index
    %c0_9 = arith.constant 0 : index
    %14 = vector.load %arg4[%c0_8, %c0_9] : memref<64x32xf32, #tpu.memory_space<vmem>>, vector<64x32xf32>
    %cst_10 = arith.constant dense<0.000000e+00> : vector<16x32xf32>
    %15 = tpu.matmul %13, %14, %cst_10 {dimension_numbers = #tpu.dot_dimension_numbers<[1], [0], [0], [1], [0, 0, 1, 1], [], []>, precision = #tpu.contract_precision<fp32>} : vector<16x64xf32>, vector<64x32xf32>, vector<16x32xf32> -> vector<16x32xf32>
    %c0_11 = arith.constant 0 : index
    %c0_12 = arith.constant 0 : index
    %16 = vector.load %arg5[%c0_11, %c0_12] : memref<1x32xf32, #tpu.memory_space<vmem>>, vector<1x32xf32>
    %17 = vector.broadcast %16 : vector<1x32xf32> to vector<16x32xf32>
    %18 = arith.addf %15, %17 : vector<16x32xf32>
    %c0_13 = arith.constant 0 : index
    %c0_14 = arith.constant 0 : index
    %19 = vector.load %arg6[%c0_13, %c0_14] : memref<16x32xf32, #tpu.memory_space<vmem>>, vector<16x32xf32>
    tpu.vector_store %arg6[%c0_13, %c0_14], %18 {strides = array<i32>} : memref<16x32xf32, #tpu.memory_space<vmem>>, vector<16x32xf32>,
    return
  }
  func.func @transform_0(%arg0: i32) -> (i32, i32) {
    %c0_i32 = arith.constant 0 : i32
    %c0_i32_0 = arith.constant 0 : i32
    return %arg0, %c0_i32 : i32, i32
  }
  func.func @transform_1(%arg0: i32) -> (i32, i32) {
    %c0_i32 = arith.constant 0 : i32
    %c0_i32_0 = arith.constant 0 : i32
    %c0_i32_1 = arith.constant 0 : i32
    return %c0_i32, %c0_i32_0 : i32, i32
  }
  func.func @transform_2(%arg0: i32) -> (i32, i32) {
    %c0_i32 = arith.constant 0 : i32
    %c0_i32_0 = arith.constant 0 : i32
    %c0_i32_1 = arith.constant 0 : i32
    return %c0_i32, %c0_i32_0 : i32, i32
  }
  func.func @transform_3(%arg0: i32) -> (i32, i32) {
    %c0_i32 = arith.constant 0 : i32
    %c0_i32_0 = arith.constant 0 : i32
    %c0_i32_1 = arith.constant 0 : i32
    return %c0_i32, %c0_i32_0 : i32, i32
  }
  func.func @transform_4(%arg0: i32) -> (i32, i32) {
    %c0_i32 = arith.constant 0 : i32
    %c0_i32_0 = arith.constant 0 : i32
    %c0_i32_1 = arith.constant 0 : i32
    return %c0_i32, %c0_i32_0 : i32, i32
  }
  func.func @transform_5(%arg0: i32) -> (i32, i32) {
    %c0_i32 = arith.constant 0 : i32
    %c0_i32_0 = arith.constant 0 : i32
    return %arg0, %c0_i32 : i32, i32
  }
}

</mosaic_0001>

<llo_original>
// kernel: tpu_custom_call.1
$region0: #{tpu_custom_call.1}
  #allocation0 [shape = 'u32[]', space=smem, size = 0x4, offset = 0x4, fixed_abs, tag = 'smem constant byte address 0x4 - core index']
  #allocation1 [shape = 'u32[144,128]{1,0:T(1,128)}', space=vmem, size = 0x12000, scoped, tag = 'internal scratch']
  %s0 = inlined_call_operand.vmem [shape: f32[16,32], index: 0, kind: input, shape index: {}]
  %s1 = inlined_call_operand.vmem [shape: f32[32,64], index: 1, kind: input, shape index: {}]
  %s2 = inlined_call_operand.vmem [shape: f32[1,64], index: 2, kind: input, shape index: {}]
  %s3 = inlined_call_operand.vmem [shape: f32[64,32], index: 3, kind: input, shape index: {}]
  %s4 = inlined_call_operand.vmem [shape: f32[1,32], index: 4, kind: input, shape index: {}]
  %s5 = inlined_call_operand.hbm [shape: f32[16,32], index: 5, kind: output, shape index: {}]
  %s6 = sld [smem:[#allocation0]]
  $region30: #{tpu_custom_call.1} parent=0
    _
  %s8 = ssub.s32 1, %s6
  %s9 = scalar_select 0, %s8, %s6
  $region1: #{tpu_custom_call.1} parent=0
    #allocation2 [shape = 'u8[8192]{0}', space=vmem, size = 0x2000, scoped, tag = 'output window, operand 0, single buffered']
    #allocation3 [shape = 's32[1]{0}', space=sflag, size = 0x4, scoped, tag = 'scoped memory for tpu_custom_call.1']
    %10 = vsyncpa [#allocation3], 0
    // Predicated region
    $region2: #{tpu_custom_call.1} parent=1 // pred_check
      _
    $region3: #{tpu_custom_call.1} parent=1 // pred_check_branch
      %12 = sbr.rel (0) target = $region5
    $region4: #{tpu_custom_call.1} parent=1 // pred_region
      _
    $region5: #{tpu_custom_call.1} parent=1 // pred_fallthru
      _
    // Predicated region
    $region6: #{tpu_custom_call.1} parent=1 // pred_check
      _
    $region7: #{tpu_custom_call.1} parent=1 // pred_check_branch
      %14 = sbr.rel (0) target = $region9
    $region8: #{tpu_custom_call.1} parent=1 // pred_region
      _
    $region9: #{tpu_custom_call.1} parent=1 // pred_fallthru
      _
    // Predicated region
    $region10: #{tpu_custom_call.1} parent=1 // pred_check
      _
    $region11: #{tpu_custom_call.1} parent=1 // pred_check_branch
      %16 = sbr.rel (0) target = $region13
    $region12: #{tpu_custom_call.1} parent=1 // pred_region
      _
    $region13: #{tpu_custom_call.1} parent=1 // pred_fallthru
      _
    // Predicated region
    $region14: #{tpu_custom_call.1} parent=1 // pred_check
      _
    $region15: #{tpu_custom_call.1} parent=1 // pred_check_branch
      %18 = sbr.rel (0) target = $region17
    $region16: #{tpu_custom_call.1} parent=1 // pred_region
      _
    $region17: #{tpu_custom_call.1} parent=1 // pred_fallthru
      _
    // Predicated region
    $region18: #{tpu_custom_call.1} parent=1 // pred_check
      _
    $region19: #{tpu_custom_call.1} parent=1 // pred_check_branch
      %20 = sbr.rel (0) target = $region21
    $region20: #{tpu_custom_call.1} parent=1 // pred_region
      _
    $region21: #{tpu_custom_call.1} parent=1 // pred_fallthru
      _
    %v21 = vld [vmem:[%s0] sm:$0xff]
    %v22 = vld [vmem:[%s0 + $0x8] sm:$0xff]
    %v23 = vld [vmem:[%s1] sm:$0xff]
    %v24 = vld [vmem:[%s1 + $0x8] sm:$0xff]
    %v25 = vld [vmem:[%s1 + $0x10] sm:$0xff]
    %v26 = vld [vmem:[%s1 + $0x18] sm:$0xff]
    %v27 = vld [vmem:[%s2] sm:$0x1]
    %v29 = vlaneseq
    %v30 = vshrl.u32 %v29, 7
    %v31 = vsub.s32 0, %v30
    %v32 = vrot.slane %v27, %v31
    %vm34 = vcmask 261120
    %v36 = vsel %vm34, %v21, 0
    %v39 = vsel %vm34, %v22, 0
    %41 = vmatprep.subr.mxu0 0.0
    %v42 = vand.u32 %v23, 4294901760
    %43 = vmatpush1.msra.mxu0 %v42
    %44 = vmatprep.subr.mxu0 0.0
    %v45 = vand.u32 %v24, 4294901760
    %46 = vmatpush1.msra.mxu0 %v45
    %47 = vmatprep.subr.mxu0 0.0
    %v48 = vand.u32 %v25, 4294901760
    %49 = vmatpush1.msra.mxu0 %v48
    %50 = vmatprep.subr.mxu0 0.0
    %v51 = vand.u32 %v26, 4294901760
    %52 = vmatpush1.msra.mxu0 %v51
    %53 = vmatprep.subr.mxu0 0.0
    %54 = vmatpush1.msra.mxu0 0.0
    %55 = vmatprep.subr.mxu0 0.0
    %56 = vmatpush1.msra.mxu0 0.0
    %57 = vmatprep.subr.mxu0 0.0
    %58 = vmatpush1.msra.mxu0 0.0
    %59 = vmatprep.subr.mxu0 0.0
    %60 = vmatpush1.msra.mxu0 0.0
    %61 = vmatprep.subr.mxu0 0.0
    %62 = vmatpush1.msra.mxu0 0.0
    %63 = vmatprep.subr.mxu0 0.0
    %64 = vmatpush1.msra.mxu0 0.0
    %65 = vmatprep.subr.mxu0 0.0
    %66 = vmatpush1.msra.mxu0 0.0
    %67 = vmatprep.subr.mxu0 0.0
    %68 = vmatpush1.msra.mxu0 0.0
    %69 = vmatprep.subr.mxu0 0.0
    %70 = vmatpush1.msra.mxu0 0.0
    %71 = vmatprep.subr.mxu0 0.0
    %72 = vmatpush1.msra.mxu0 0.0
    %73 = vmatprep.subr.mxu0 0.0
    %74 = vmatpush1.msra.mxu0 0.0
    %75 = vmatprep.subr.mxu0 0.0
    %76 = vmatpush1.msra.mxu0 0.0
    %77 = vmatprep.subr.mxu0 0.0
    %78 = vmatpush1.msra.mxu0 0.0
    %79 = vmatprep.subr.mxu0 0.0
    %80 = vmatpush1.msra.mxu0 0.0
    %81 = vmatprep.subr.mxu0 0.0
    %82 = vmatpush1.msra.mxu0 0.0
    %83 = vmatprep.subr.mxu0 0.0
    %84 = vmatpush1.msra.mxu0 0.0
    %85 = vmatprep.subr.mxu0 0.0
    %86 = vmatpush1.msra.mxu0 0.0
    %87 = vmatprep.subr.mxu0 0.0
    %88 = vmatpush1.msra.mxu0 0.0
    %89 = vmatprep.subr.mxu0 0.0
    %90 = vmatpush1.msra.mxu0 0.0
    %91 = vmatprep.subr.mxu0 0.0
    %92 = vmatpush1.msra.mxu0 0.0
    %93 = vmatprep.subr.mxu0 0.0
    %94 = vmatpush1.msra.mxu0 0.0
    %95 = vmatprep.subr.mxu0 0.0
    %96 = vmatpush1.msra.mxu0 0.0
    %97 = vmatprep.subr.mxu0 0.0
    %98 = vmatpush1.msra.mxu0 0.0
    %99 = vmatprep.subr.mxu0 0.0
    %100 = vmatpush1.msra.mxu0 0.0
    %101 = vmatprep.subr.mxu0 0.0
    %102 = vmatpush1.msra.mxu0 0.0
    %103 = vmatprep.subr.mxu0 0.0
    %104 = vmatpush1.msra.mxu0 0.0
    %105 = vmatprep.subr.mxu0 0.0
    %106 = vmatpush1.msra.mxu0 0.0
    %107 = vmatprep.subr.mxu0 0.0
    %108 = vmatpush1.msra.mxu0 0.0
    %109 = vmatprep.mubr.f32.mxu0 0.0
    %v110 = vand.u32 %v36, 4294901760
    %v111 = vsub.f32 %v36, %v110
    %v112 = vand.u32 %v111, 4294901760
    %v113 = vsub.f32 %v111, %v112
    %v114 = vand.u32 %v113, 4294901760
    %115 = vmatmul.mubr.f32.gmra.mrb[0].mxu0 %v114
    %v116 = vpop.f32.mrb[0].mxu0
    %v117 = vadd.f32 %v32, %v116
    %v118 = vpop.f32.mrb[0].mxu0
    %119 = vmatprep.mubr.f32.mxu0 0.0
    %v120 = vand.u32 %v39, 4294901760
    %v121 = vsub.f32 %v39, %v120
    %v122 = vand.u32 %v121, 4294901760
    %v123 = vsub.f32 %v121, %v122
    %v124 = vand.u32 %v123, 4294901760
    %125 = vmatmul.mubr.f32.gmra.mrb[0].mxu0 %v124
    %v126 = vpop.f32.mrb[0].mxu0
    %v127 = vadd.f32 %v32, %v126
    %v128 = vpop.f32.mrb[0].mxu0
    %129 = vdwg.mxu0
    %130 = vmatprep.subr.mxu0 0.0
    %v131 = vand.u32 %v23, 4294901760
    %v132 = vsub.f32 %v23, %v131
    %v133 = vand.u32 %v132, 4294901760
    %v134 = vsub.f32 %v132, %v133
    %v135 = vand.u32 %v134, 4294901760
    %136 = vmatpush1.msra.mxu0 %v135
    %137 = vmatprep.subr.mxu0 0.0
    %v138 = vand.u32 %v24, 4294901760
    %v139 = vsub.f32 %v24, %v138
    %v140 = vand.u32 %v139, 4294901760
    %v141 = vsub.f32 %v139, %v140
    %v142 = vand.u32 %v141, 4294901760
    %143 = vmatpush1.msra.mxu0 %v142
    %144 = vmatprep.subr.mxu0 0.0
    %v145 = vand.u32 %v25, 4294901760
    %v146 = vsub.f32 %v25, %v145
    %v147 = vand.u32 %v146, 4294901760
    %v148 = vsub.f32 %v146, %v147
    %v149 = vand.u32 %v148, 4294901760
    %150 = vmatpush1.msra.mxu0 %v149
    %151 = vmatprep.subr.mxu0 0.0
    %v152 = vand.u32 %v26, 4294901760
    %v153 = vsub.f32 %v26, %v152
    %v154 = vand.u32 %v153, 4294901760
    %v155 = vsub.f32 %v153, %v154
    %v156 = vand.u32 %v155, 4294901760
    %157 = vmatpush1.msra.mxu0 %v156
    %158 = vmatprep.subr.mxu0 0.0
    %159 = vmatpush1.msra.mxu0 0.0
    %160 = vmatprep.subr.mxu0 0.0
    %161 = vmatpush1.msra.mxu0 0.0
    %162 = vmatprep.subr.mxu0 0.0
    %163 = vmatpush1.msra.mxu0 0.0
    %164 = vmatprep.subr.mxu0 0.0
    %165 = vmatpush1.msra.mxu0 0.0
    %166 = vmatprep.subr.mxu0 0.0
    %167 = vmatpush1.msra.mxu0 0.0
    %168 = vmatprep.subr.mxu0 0.0
    %169 = vmatpush1.msra.mxu0 0.0
    %170 = vmatprep.subr.mxu0 0.0
    %171 = vmatpush1.msra.mxu0 0.0
    %172 = vmatprep.subr.mxu0 0.0
    %173 = vmatpush1.msra.mxu0 0.0
    %174 = vmatprep.subr.mxu0 0.0
    %175 = vmatpush1.msra.mxu0 0.0
    %176 = vmatprep.subr.mxu0 0.0
    %177 = vmatpush1.msra.mxu0 0.0
    %178 = vmatprep.subr.mxu0 0.0
    %179 = vmatpush1.msra.mxu0 0.0
    %180 = vmatprep.subr.mxu0 0.0
    %181 = vmatpush1.msra.mxu0 0.0
    %182 = vmatprep.subr.mxu0 0.0
    %183 = vmatpush1.msra.mxu0 0.0
    %184 = vmatprep.subr.mxu0 0.0
    %185 = vmatpush1.msra.mxu0 0.0
    %186 = vmatprep.subr.mxu0 0.0
    %187 = vmatpush1.msra.mxu0 0.0
    %188 = vmatprep.subr.mxu0 0.0
    %189 = vmatpush1.msra.mxu0 0.0
    %190 = vmatprep.subr.mxu0 0.0
    %191 = vmatpush1.msra.mxu0 0.0
    %192 = vmatprep.subr.mxu0 0.0
    %193 = vmatpush1.msra.mxu0 0.0
    %194 = vmatprep.subr.mxu0 0.0
    %195 = vmatpush1.msra.mxu0 0.0
    %196 = vmatprep.subr.mxu0 0.0
    %197 = vmatpush1.msra.mxu0 0.0
    %198 = vmatprep.subr.mxu0 0.0
    %199 = vmatpush1.msra.mxu0 0.0
    %200 = vmatprep.subr.mxu0 0.0
    %201 = vmatpush1.msra.mxu0 0.0
    %202 = vmatprep.subr.mxu0 0.0
    %203 = vmatpush1.msra.mxu0 0.0
    %204 = vmatprep.subr.mxu0 0.0
    %205 = vmatpush1.msra.mxu0 0.0
    %206 = vmatprep.subr.mxu0 0.0
    %207 = vmatpush1.msra.mxu0 0.0
    %208 = vmatprep.subr.mxu0 0.0
    %209 = vmatpush1.msra.mxu0 0.0
    %210 = vmatprep.subr.mxu0 0.0
    %211 = vmatpush1.msra.mxu0 0.0
    %212 = vmatprep.subr.mxu0 0.0
    %213 = vmatpush1.msra.mxu0 0.0
    %214 = vmatprep.mubr.f32.mxu0 0.0
    %v215 = vand.u32 %v36, 4294901760
    %216 = vmatmul.mubr.f32.gmra.mrb[0].mxu0 %v215
    %v217 = vpop.f32.mrb[0].mxu0
    %v218 = vadd.f32 %v117, %v217
    %v219 = vpop.f32.mrb[0].mxu0
    %220 = vmatprep.mubr.f32.mxu0 0.0
    %v221 = vand.u32 %v39, 4294901760
    %222 = vmatmul.mubr.f32.gmra.mrb[0].mxu0 %v221
    %v223 = vpop.f32.mrb[0].mxu0
    %v224 = vadd.f32 %v127, %v223
    %v225 = vpop.f32.mrb[0].mxu0
    %226 = vdwg.mxu0
    %227 = vmatprep.subr.mxu0 0.0
    %v228 = vand.u32 %v23, 4294901760
    %v229 = vsub.f32 %v23, %v228
    %230 = vmatpush1.msra.mxu0 %v229
    %231 = vmatprep.subr.mxu0 0.0
    %v232 = vand.u32 %v24, 4294901760
    %v233 = vsub.f32 %v24, %v232
    %234 = vmatpush1.msra.mxu0 %v233
    %235 = vmatprep.subr.mxu0 0.0
    %v236 = vand.u32 %v25, 4294901760
    %v237 = vsub.f32 %v25, %v236
    %238 = vmatpush1.msra.mxu0 %v237
    %239 = vmatprep.subr.mxu0 0.0
    %v240 = vand.u32 %v26, 4294901760
    %v241 = vsub.f32 %v26, %v240
    %242 = vmatpush1.msra.mxu0 %v241
    %243 = vmatprep.subr.mxu0 0.0
    %244 = vmatpush1.msra.mxu0 0.0
    %245 = vmatprep.subr.mxu0 0.0
    %246 = vmatpush1.msra.mxu0 0.0
    %247 = vmatprep.subr.mxu0 0.0
    %248 = vmatpush1.msra.mxu0 0.0
    %249 = vmatprep.subr.mxu0 0.0
    %250 = vmatpush1.msra.mxu0 0.0
    %251 = vmatprep.subr.mxu0 0.0
    %252 = vmatpush1.msra.mxu0 0.0
    %253 = vmatprep.subr.mxu0 0.0
    %254 = vmatpush1.msra.mxu0 0.0
    %255 = vmatprep.subr.mxu0 0.0
    %256 = vmatpush1.msra.mxu0 0.0
    %257 = vmatprep.subr.mxu0 0.0
    %258 = vmatpush1.msra.mxu0 0.0
    %259 = vmatprep.subr.mxu0 0.0
    %260 = vmatpush1.msra.mxu0 0.0
    %261 = vmatprep.subr.mxu0 0.0
    %262 = vmatpush1.msra.mxu0 0.0
    %263 = vmatprep.subr.mxu0 0.0
    %264 = vmatpush1.msra.mxu0 0.0
    %265 = vmatprep.subr.mxu0 0.0
    %266 = vmatpush1.msra.mxu0 0.0
    %267 = vmatprep.subr.mxu0 0.0
    %268 = vmatpush1.msra.mxu0 0.0
    %269 = vmatprep.subr.mxu0 0.0
    %270 = vmatpush1.msra.mxu0 0.0
    %271 = vmatprep.subr.mxu0 0.0
    %272 = vmatpush1.msra.mxu0 0.0
    %273 = vmatprep.subr.mxu0 0.0
    %274 = vmatpush1.msra.mxu0 0.0
    %275 = vmatprep.subr.mxu0 0.0
    %276 = vmatpush1.msra.mxu0 0.0
    %277 = vmatprep.subr.mxu0 0.0
    %278 = vmatpush1.msra.mxu0 0.0
    %279 = vmatprep.subr.mxu0 0.0
    %280 = vmatpush1.msra.mxu0 0.0
    %281 = vmatprep.subr.mxu0 0.0
    %282 = vmatpush1.msra.mxu0 0.0
    %283 = vmatprep.subr.mxu0 0.0
    %284 = vmatpush1.msra.mxu0 0.0
    %285 = vmatprep.subr.mxu0 0.0
    %286 = vmatpush1.msra.mxu0 0.0
    %287 = vmatprep.subr.mxu0 0.0
    %288 = vmatpush1.msra.mxu0 0.0
    %289 = vmatprep.subr.mxu0 0.0
    %290 = vmatpush1.msra.mxu0 0.0
    %291 = vmatprep.subr.mxu0 0.0
    %292 = vmatpush1.msra.mxu0 0.0
    %293 = vmatprep.subr.mxu0 0.0
    %294 = vmatpush1.msra.mxu0 0.0
    %295 = vmatprep.subr.mxu0 0.0
    %296 = vmatpush1.msra.mxu0 0.0
    %297 = vmatprep.subr.mxu0 0.0
    %298 = vmatpush1.msra.mxu0 0.0
    %299 = vmatprep.mubr.f32.mxu0 0.0
    %v300 = vand.u32 %v36, 4294901760
    %v301 = vsub.f32 %v36, %v300
    %302 = vmatmul.mubr.f32.gmra.mrb[0].mxu0 %v301
    %v303 = vpop.f32.mrb[0].mxu0
    %v304 = vadd.f32 %v218, %v303
    %v305 = vpop.f32.mrb[0].mxu0
    %306 = vmatprep.mubr.f32.mxu0 0.0
    %v307 = vand.u32 %v39, 4294901760
    %v308 = vsub.f32 %v39, %v307
    %309 = vmatmul.mubr.f32.gmra.mrb[0].mxu0 %v308
    %v310 = vpop.f32.mrb[0].mxu0
    %v311 = vadd.f32 %v224, %v310
    %v312 = vpop.f32.mrb[0].mxu0
    %313 = vdwg.mxu0
    %314 = vmatprep.subr.mxu0 0.0
    %v315 = vand.u32 %v23, 4294901760
    %316 = vmatpush1.msra.mxu0 %v315
    %317 = vmatprep.subr.mxu0 0.0
    %v318 = vand.u32 %v24, 4294901760
    %319 = vmatpush1.msra.mxu0 %v318
    %320 = vmatprep.subr.mxu0 0.0
    %v321 = vand.u32 %v25, 4294901760
    %322 = vmatpush1.msra.mxu0 %v321
    %323 = vmatprep.subr.mxu0 0.0
    %v324 = vand.u32 %v26, 4294901760
    %325 = vmatpush1.msra.mxu0 %v324
    %326 = vmatprep.subr.mxu0 0.0
    %327 = vmatpush1.msra.mxu0 0.0
    %328 = vmatprep.subr.mxu0 0.0
    %329 = vmatpush1.msra.mxu0 0.0
    %330 = vmatprep.subr.mxu0 0.0
    %331 = vmatpush1.msra.mxu0 0.0
    %332 = vmatprep.subr.mxu0 0.0
    %333 = vmatpush1.msra.mxu0 0.0
    %334 = vmatprep.subr.mxu0 0.0
    %335 = vmatpush1.msra.mxu0 0.0
    %336 = vmatprep.subr.mxu0 0.0
    %337 = vmatpush1.msra.mxu0 0.0
    %338 = vmatprep.subr.mxu0 0.0
    %339 = vmatpush1.msra.mxu0 0.0
    %340 = vmatprep.subr.mxu0 0.0
    %341 = vmatpush1.msra.mxu0 0.0
    %342 = vmatprep.subr.mxu0 0.0
    %343 = vmatpush1.msra.mxu0 0.0
    %344 = vmatprep.subr.mxu0 0.0
    %345 = vmatpush1.msra.mxu0 0.0
    %346 = vmatprep.subr.mxu0 0.0
    %347 = vmatpush1.msra.mxu0 0.0
    %348 = vmatprep.subr.mxu0 0.0
    %349 = vmatpush1.msra.mxu0 0.0
    %350 = vmatprep.subr.mxu0 0.0
    %351 = vmatpush1.msra.mxu0 0.0
    %352 = vmatprep.subr.mxu0 0.0
    %353 = vmatpush1.msra.mxu0 0.0
    %354 = vmatprep.subr.mxu0 0.0
    %355 = vmatpush1.msra.mxu0 0.0
    %356 = vmatprep.subr.mxu0 0.0
    %357 = vmatpush1.msra.mxu0 0.0
    %358 = vmatprep.subr.mxu0 0.0
    %359 = vmatpush1.msra.mxu0 0.0
    %360 = vmatprep.subr.mxu0 0.0
    %361 = vmatpush1.msra.mxu0 0.0
    %362 = vmatprep.subr.mxu0 0.0
    %363 = vmatpush1.msra.mxu0 0.0
    %364 = vmatprep.subr.mxu0 0.0
    %365 = vmatpush1.msra.mxu0 0.0
    %366 = vmatprep.subr.mxu0 0.0
    %367 = vmatpush1.msra.mxu0 0.0
    %368 = vmatprep.subr.mxu0 0.0
    %369 = vmatpush1.msra.mxu0 0.0
    %370 = vmatprep.subr.mxu0 0.0
    %371 = vmatpush1.msra.mxu0 0.0
    %372 = vmatprep.subr.mxu0 0.0
    %373 = vmatpush1.msra.mxu0 0.0
    %374 = vmatprep.subr.mxu0 0.0
    %375 = vmatpush1.msra.mxu0 0.0
    %376 = vmatprep.subr.mxu0 0.0
    %377 = vmatpush1.msra.mxu0 0.0
    %378 = vmatprep.subr.mxu0 0.0
    %379 = vmatpush1.msra.mxu0 0.0
    %380 = vmatprep.subr.mxu0 0.0
    %381 = vmatpush1.msra.mxu0 0.0
    %382 = vmatprep.mubr.f32.mxu0 0.0
    %v383 = vand.u32 %v36, 4294901760
    %v384 = vsub.f32 %v36, %v383
    %v385 = vand.u32 %v384, 4294901760
    %386 = vmatmul.mubr.f32.gmra.mrb[0].mxu0 %v385
    %v387 = vpop.f32.mrb[0].mxu0
    %v388 = vadd.f32 %v304, %v387
    %v389 = vpop.f32.mrb[0].mxu0
    %390 = vmatprep.mubr.f32.mxu0 0.0
    %v391 = vand.u32 %v39, 4294901760
    %v392 = vsub.f32 %v39, %v391
    %v393 = vand.u32 %v392, 4294901760
    %394 = vmatmul.mubr.f32.gmra.mrb[0].mxu0 %v393
    %v395 = vpop.f32.mrb[0].mxu0
    %v396 = vadd.f32 %v311, %v395
    %v397 = vpop.f32.mrb[0].mxu0
    %398 = vdwg.mxu0
    %399 = vmatprep.subr.mxu0 0.0
    %v400 = vand.u32 %v23, 4294901760
    %v401 = vsub.f32 %v23, %v400
    %v402 = vand.u32 %v401, 4294901760
    %403 = vmatpush1.msra.mxu0 %v402
    %404 = vmatprep.subr.mxu0 0.0
    %v405 = vand.u32 %v24, 4294901760
    %v406 = vsub.f32 %v24, %v405
    %v407 = vand.u32 %v406, 4294901760
    %408 = vmatpush1.msra.mxu0 %v407
    %409 = vmatprep.subr.mxu0 0.0
    %v410 = vand.u32 %v25, 4294901760
    %v411 = vsub.f32 %v25, %v410
    %v412 = vand.u32 %v411, 4294901760
    %413 = vmatpush1.msra.mxu0 %v412
    %414 = vmatprep.subr.mxu0 0.0
    %v415 = vand.u32 %v26, 4294901760
    %v416 = vsub.f32 %v26, %v415
    %v417 = vand.u32 %v416, 4294901760
    %418 = vmatpush1.msra.mxu0 %v417
    %419 = vmatprep.subr.mxu0 0.0
    %420 = vmatpush1.msra.mxu0 0.0
    %421 = vmatprep.subr.mxu0 0.0
    %422 = vmatpush1.msra.mxu0 0.0
    %423 = vmatprep.subr.mxu0 0.0
    %424 = vmatpush1.msra.mxu0 0.0
    %425 = vmatprep.subr.mxu0 0.0
    %426 = vmatpush1.msra.mxu0 0.0
    %427 = vmatprep.subr.mxu0 0.0
    %428 = vmatpush1.msra.mxu0 0.0
    %429 = vmatprep.subr.mxu0 0.0
    %430 = vmatpush1.msra.mxu0 0.0
    %431 = vmatprep.subr.mxu0 0.0
    %432 = vmatpush1.msra.mxu0 0.0
    %433 = vmatprep.subr.mxu0 0.0
    %434 = vmatpush1.msra.mxu0 0.0
    %435 = vmatprep.subr.mxu0 0.0
    %436 = vmatpush1.msra.mxu0 0.0
    %437 = vmatprep.subr.mxu0 0.0
    %438 = vmatpush1.msra.mxu0 0.0
    %439 = vmatprep.subr.mxu0 0.0
    %440 = vmatpush1.msra.mxu0 0.0
    %441 = vmatprep.subr.mxu0 0.0
    %442 = vmatpush1.msra.mxu0 0.0
    %443 = vmatprep.subr.mxu0 0.0
    %444 = vmatpush1.msra.mxu0 0.0
    %445 = vmatprep.subr.mxu0 0.0
    %446 = vmatpush1.msra.mxu0 0.0
    %447 = vmatprep.subr.mxu0 0.0
    %448 = vmatpush1.msra.mxu0 0.0
    %449 = vmatprep.subr.mxu0 0.0
    %450 = vmatpush1.msra.mxu0 0.0
    %451 = vmatprep.subr.mxu0 0.0
    %452 = vmatpush1.msra.mxu0 0.0
    %453 = vmatprep.subr.mxu0 0.0
    %454 = vmatpush1.msra.mxu0 0.0
    %455 = vmatprep.subr.mxu0 0.0
    %456 = vmatpush1.msra.mxu0 0.0
    %457 = vmatprep.subr.mxu0 0.0
    %458 = vmatpush1.msra.mxu0 0.0
    %459 = vmatprep.subr.mxu0 0.0
    %460 = vmatpush1.msra.mxu0 0.0
    %461 = vmatprep.subr.mxu0 0.0
    %462 = vmatpush1.msra.mxu0 0.0
    %463 = vmatprep.subr.mxu0 0.0
    %464 = vmatpush1.msra.mxu0 0.0
    %465 = vmatprep.subr.mxu0 0.0
    %466 = vmatpush1.msra.mxu0 0.0
    %467 = vmatprep.subr.mxu0 0.0
    %468 = vmatpush1.msra.mxu0 0.0
    %469 = vmatprep.subr.mxu0 0.0
    %470 = vmatpush1.msra.mxu0 0.0
    %471 = vmatprep.subr.mxu0 0.0
    %472 = vmatpush1.msra.mxu0 0.0
    %473 = vmatprep.subr.mxu0 0.0
    %474 = vmatpush1.msra.mxu0 0.0
    %475 = vmatprep.mubr.f32.mxu0 0.0
    %v476 = vand.u32 %v36, 4294901760
    %477 = vmatmul.mubr.f32.gmra.mrb[0].mxu0 %v476
    %v478 = vpop.f32.mrb[0].mxu0
    %v479 = vadd.f32 %v388, %v478
    %v480 = vpop.f32.mrb[0].mxu0
    %481 = vmatprep.mubr.f32.mxu0 0.0
    %v482 = vand.u32 %v39, 4294901760
    %483 = vmatmul.mubr.f32.gmra.mrb[0].mxu0 %v482
    %v484 = vpop.f32.mrb[0].mxu0
    %v485 = vadd.f32 %v396, %v484
    %v486 = vpop.f32.mrb[0].mxu0
    %487 = vdwg.mxu0
    %488 = vmatprep.subr.mxu0 0.0
    %v489 = vand.u32 %v23, 4294901760
    %490 = vmatpush1.msra.mxu0 %v489
    %491 = vmatprep.subr.mxu0 0.0
    %v492 = vand.u32 %v24, 4294901760
    %493 = vmatpush1.msra.mxu0 %v492
    %494 = vmatprep.subr.mxu0 0.0
    %v495 = vand.u32 %v25, 4294901760
    %496 = vmatpush1.msra.mxu0 %v495
    %497 = vmatprep.subr.mxu0 0.0
    %v498 = vand.u32 %v26, 4294901760
    %499 = vmatpush1.msra.mxu0 %v498
    %500 = vmatprep.subr.mxu0 0.0
    %501 = vmatpush1.msra.mxu0 0.0
    %502 = vmatprep.subr.mxu0 0.0
    %503 = vmatpush1.msra.mxu0 0.0
    %504 = vmatprep.subr.mxu0 0.0
    %505 = vmatpush1.msra.mxu0 0.0
    %506 = vmatprep.subr.mxu0 0.0
    %507 = vmatpush1.msra.mxu0 0.0
    %508 = vmatprep.subr.mxu0 0.0
    %509 = vmatpush1.msra.mxu0 0.0
    %510 = vmatprep.subr.mxu0 0.0
    %511 = vmatpush1.msra.mxu0 0.0
    %512 = vmatprep.subr.mxu0 0.0
    %513 = vmatpush1.msra.mxu0 0.0
    %514 = vmatprep.subr.mxu0 0.0
    %515 = vmatpush1.msra.mxu0 0.0
    %516 = vmatprep.subr.mxu0 0.0
    %517 = vmatpush1.msra.mxu0 0.0
    %518 = vmatprep.subr.mxu0 0.0
    %519 = vmatpush1.msra.mxu0 0.0
    %520 = vmatprep.subr.mxu0 0.0
    %521 = vmatpush1.msra.mxu0 0.0
    %522 = vmatprep.subr.mxu0 0.0
    %523 = vmatpush1.msra.mxu0 0.0
    %524 = vmatprep.subr.mxu0 0.0
    %525 = vmatpush1.msra.mxu0 0.0
    %526 = vmatprep.subr.mxu0 0.0
    %527 = vmatpush1.msra.mxu0 0.0
    %528 = vmatprep.subr.mxu0 0.0
    %529 = vmatpush1.msra.mxu0 0.0
    %530 = vmatprep.subr.mxu0 0.0
    %531 = vmatpush1.msra.mxu0 0.0
    %532 = vmatprep.subr.mxu0 0.0
    %533 = vmatpush1.msra.mxu0 0.0
    %534 = vmatprep.subr.mxu0 0.0
    %535 = vmatpush1.msra.mxu0 0.0
    %536 = vmatprep.subr.mxu0 0.0
    %537 = vmatpush1.msra.mxu0 0.0
    %538 = vmatprep.subr.mxu0 0.0
    %539 = vmatpush1.msra.mxu0 0.0
    %540 = vmatprep.subr.mxu0 0.0
    %541 = vmatpush1.msra.mxu0 0.0
    %542 = vmatprep.subr.mxu0 0.0
    %543 = vmatpush1.msra.mxu0 0.0
    %544 = vmatprep.subr.mxu0 0.0
    %545 = vmatpush1.msra.mxu0 0.0
    %546 = vmatprep.subr.mxu0 0.0
    %547 = vmatpush1.msra.mxu0 0.0
    %548 = vmatprep.subr.mxu0 0.0
    %549 = vmatpush1.msra.mxu0 0.0
    %550 = vmatprep.subr.mxu0 0.0
    %551 = vmatpush1.msra.mxu0 0.0
    %552 = vmatprep.subr.mxu0 0.0
    %553 = vmatpush1.msra.mxu0 0.0
    %554 = vmatprep.subr.mxu0 0.0
    %555 = vmatpush1.msra.mxu0 0.0
    %556 = vmatprep.mubr.f32.mxu0 0.0
    %v557 = vand.u32 %v36, 4294901760
    %558 = vmatmul.mubr.f32.gmra.mrb[0].mxu0 %v557
    %v559 = vpop.f32.mrb[0].mxu0
    %v560 = vadd.f32 %v479, %v559
    %v561 = vpop.f32.mrb[0].mxu0
    %562 = vmatprep.mubr.f32.mxu0 0.0
    %v563 = vand.u32 %v39, 4294901760
    %564 = vmatmul.mubr.f32.gmra.mrb[0].mxu0 %v563
    %v565 = vpop.f32.mrb[0].mxu0
    %v566 = vadd.f32 %v485, %v565
    %v567 = vpop.f32.mrb[0].mxu0
    %568 = vdwg.mxu0
    %v569 = vmul.f32 %v560, 0.5
    %v570 = vmul.f32 %v566, 0.5
    %v571 = vmul.f32 %v560, 0.70710677
    %v572 = vmul.f32 %v566, 0.70710677
    %v573 = verf.f32.pop %v571
    %v574 = verf.f32.pop %v572
    %v575 = vadd.f32 %v573, 1.0
    %v576 = vadd.f32 %v574, 1.0
    %v577 = vmul.f32 %v569, %v575
    %v578 = vmul.f32 %v570, %v576
    %v579 = vld [vmem:[%s3] sm:$0xff]
    %v580 = vld [vmem:[%s3 + $0x8] sm:$0xff]
    %v581 = vld [vmem:[%s3 + $0x10] sm:$0xff]
    %v582 = vld [vmem:[%s3 + $0x18] sm:$0xff]
    %v583 = vld [vmem:[%s3 + $0x20] sm:$0xff]
    %v584 = vld [vmem:[%s3 + $0x28] sm:$0xff]
    %v585 = vld [vmem:[%s3 + $0x30] sm:$0xff]
    %v586 = vld [vmem:[%s3 + $0x38] sm:$0xff]
    %v587 = vld [vmem:[%s4] sm:$0x1]
    %v589 = vlaneseq
    %v590 = vshrl.u32 %v589, 7
    %v591 = vsub.s32 0, %v590
    %v592 = vrot.slane %v587, %v591
    %vm594 = vcmask 523264
    %v596 = vsel %vm594, %v577, 0
    %v599 = vsel %vm594, %v578, 0
    %601 = vmatprep.subr.mxu0 0.0
    %v602 = vand.u32 %v579, 4294901760
    %603 = vmatpush1.msra.mxu0 %v602
    %604 = vmatprep.subr.mxu0 0.0
    %v605 = vand.u32 %v580, 4294901760
    %606 = vmatpush1.msra.mxu0 %v605
    %607 = vmatprep.subr.mxu0 0.0
    %v608 = vand.u32 %v581, 4294901760
    %609 = vmatpush1.msra.mxu0 %v608
    %610 = vmatprep.subr.mxu0 0.0
    %v611 = vand.u32 %v582, 4294901760
    %612 = vmatpush1.msra.mxu0 %v611
    %613 = vmatprep.subr.mxu0 0.0
    %v614 = vand.u32 %v583, 4294901760
    %615 = vmatpush1.msra.mxu0 %v614
    %616 = vmatprep.subr.mxu0 0.0
    %v617 = vand.u32 %v584, 4294901760
    %618 = vmatpush1.msra.mxu0 %v617
    %619 = vmatprep.subr.mxu0 0.0
    %v620 = vand.u32 %v585, 4294901760
    %621 = vmatpush1.msra.mxu0 %v620
    %622 = vmatprep.subr.mxu0 0.0
    %v623 = vand.u32 %v586, 4294901760
    %624 = vmatpush1.msra.mxu0 %v623
    %625 = vmatprep.subr.mxu0 0.0
    %626 = vmatpush1.msra.mxu0 0.0
    %627 = vmatprep.subr.mxu0 0.0
    %628 = vmatpush1.msra.mxu0 0.0
    %629 = vmatprep.subr.mxu0 0.0
    %630 = vmatpush1.msra.mxu0 0.0
    %631 = vmatprep.subr.mxu0 0.0
    %632 = vmatpush1.msra.mxu0 0.0
    %633 = vmatprep.subr.mxu0 0.0
    %634 = vmatpush1.msra.mxu0 0.0
    %635 = vmatprep.subr.mxu0 0.0
    %636 = vmatpush1.msra.mxu0 0.0
    %637 = vmatprep.subr.mxu0 0.0
    %638 = vmatpush1.msra.mxu0 0.0
    %639 = vmatprep.subr.mxu0 0.0
    %640 = vmatpush1.msra.mxu0 0.0
    %641 = vmatprep.subr.mxu0 0.0
    %642 = vmatpush1.msra.mxu0 0.0
    %643 = vmatprep.subr.mxu0 0.0
    %644 = vmatpush1.msra.mxu0 0.0
    %645 = vmatprep.subr.mxu0 0.0
    %646 = vmatpush1.msra.mxu0 0.0
    %647 = vmatprep.subr.mxu0 0.0
    %648 = vmatpush1.msra.mxu0 0.0
    %649 = vmatprep.subr.mxu0 0.0
    %650 = vmatpush1.msra.mxu0 0.0
    %651 = vmatprep.subr.mxu0 0.0
    %652 = vmatpush1.msra.mxu0 0.0
    %653 = vmatprep.subr.mxu0 0.0
    %654 = vmatpush1.msra.mxu0 0.0
    %655 = vmatprep.subr.mxu0 0.0
    %656 = vmatpush1.msra.mxu0 0.0
    %657 = vmatprep.subr.mxu0 0.0
    %658 = vmatpush1.msra.mxu0 0.0
    %659 = vmatprep.subr.mxu0 0.0
    %660 = vmatpush1.msra.mxu0 0.0
    %661 = vmatprep.subr.mxu0 0.0
    %662 = vmatpush1.msra.mxu0 0.0
    %663 = vmatprep.subr.mxu0 0.0
    %664 = vmatpush1.msra.mxu0 0.0
    %665 = vmatprep.subr.mxu0 0.0
    %666 = vmatpush1.msra.mxu0 0.0
    %667 = vmatprep.subr.mxu0 0.0
    %668 = vmatpush1.msra.mxu0 0.0
    %669 = vmatprep.subr.mxu0 0.0
    %670 = vmatpush1.msra.mxu0 0.0
    %671 = vmatprep.subr.mxu0 0.0
    %672 = vmatpush1.msra.mxu0 0.0
    %673 = vmatprep.mubr.f32.mxu0 0.0
    %v674 = vand.u32 %v596, 4294901760
    %v675 = vsub.f32 %v596, %v674
    %v676 = vand.u32 %v675, 4294901760
    %v677 = vsub.f32 %v675, %v676
    %v678 = vand.u32 %v677, 4294901760
    %679 = vmatmul.mubr.f32.gmra.mrb[0].mxu0 %v678
    %v680 = vpop.f32.mrb[0].mxu0
    %v681 = vadd.f32 %v592, %v680
    %v682 = vpop.f32.mrb[0].mxu0
    %683 = vmatprep.mubr.f32.mxu0 0.0
    %v684 = vand.u32 %v599, 4294901760
    %v685 = vsub.f32 %v599, %v684
    %v686 = vand.u32 %v685, 4294901760
    %v687 = vsub.f32 %v685, %v686
    %v688 = vand.u32 %v687, 4294901760
    %689 = vmatmul.mubr.f32.gmra.mrb[0].mxu0 %v688
    %v690 = vpop.f32.mrb[0].mxu0
    %v691 = vadd.f32 %v592, %v690
    %v692 = vpop.f32.mrb[0].mxu0
    %693 = vdwg.mxu0
    %694 = vmatprep.subr.mxu0 0.0
    %v695 = vand.u32 %v579, 4294901760
    %v696 = vsub.f32 %v579, %v695
    %v697 = vand.u32 %v696, 4294901760
    %v698 = vsub.f32 %v696, %v697
    %v699 = vand.u32 %v698, 4294901760
    %700 = vmatpush1.msra.mxu0 %v699
    %701 = vmatprep.subr.mxu0 0.0
    %v702 = vand.u32 %v580, 4294901760
    %v703 = vsub.f32 %v580, %v702
    %v704 = vand.u32 %v703, 4294901760
    %v705 = vsub.f32 %v703, %v704
    %v706 = vand.u32 %v705, 4294901760
    %707 = vmatpush1.msra.mxu0 %v706
    %708 = vmatprep.subr.mxu0 0.0
    %v709 = vand.u32 %v581, 4294901760
    %v710 = vsub.f32 %v581, %v709
    %v711 = vand.u32 %v710, 4294901760
    %v712 = vsub.f32 %v710, %v711
    %v713 = vand.u32 %v712, 4294901760
    %714 = vmatpush1.msra.mxu0 %v713
    %715 = vmatprep.subr.mxu0 0.0
    %v716 = vand.u32 %v582, 4294901760
    %v717 = vsub.f32 %v582, %v716
    %v718 = vand.u32 %v717, 4294901760
    %v719 = vsub.f32 %v717, %v718
    %v720 = vand.u32 %v719, 4294901760
    %721 = vmatpush1.msra.mxu0 %v720
    %722 = vmatprep.subr.mxu0 0.0
    %v723 = vand.u32 %v583, 4294901760
    %v724 = vsub.f32 %v583, %v723
    %v725 = vand.u32 %v724, 4294901760
    %v726 = vsub.f32 %v724, %v725
    %v727 = vand.u32 %v726, 4294901760
    %728 = vmatpush1.msra.mxu0 %v727
    %729 = vmatprep.subr.mxu0 0.0
    %v730 = vand.u32 %v584, 4294901760
    %v731 = vsub.f32 %v584, %v730
    %v732 = vand.u32 %v731, 4294901760
    %v733 = vsub.f32 %v731, %v732
    %v734 = vand.u32 %v733, 4294901760
    %735 = vmatpush1.msra.mxu0 %v734
    %736 = vmatprep.subr.mxu0 0.0
    %v737 = vand.u32 %v585, 4294901760
    %v738 = vsub.f32 %v585, %v737
    %v739 = vand.u32 %v738, 4294901760
    %v740 = vsub.f32 %v738, %v739
    %v741 = vand.u32 %v740, 4294901760
    %742 = vmatpush1.msra.mxu0 %v741
    %743 = vmatprep.subr.mxu0 0.0
    %v744 = vand.u32 %v586, 4294901760
    %v745 = vsub.f32 %v586, %v744
    %v746 = vand.u32 %v745, 4294901760
    %v747 = vsub.f32 %v745, %v746
    %v748 = vand.u32 %v747, 4294901760
    %749 = vmatpush1.msra.mxu0 %v748
    %750 = vmatprep.subr.mxu0 0.0
    %751 = vmatpush1.msra.mxu0 0.0
    %752 = vmatprep.subr.mxu0 0.0
    %753 = vmatpush1.msra.mxu0 0.0
    %754 = vmatprep.subr.mxu0 0.0
    %755 = vmatpush1.msra.mxu0 0.0
    %756 = vmatprep.subr.mxu0 0.0
    %757 = vmatpush1.msra.mxu0 0.0
    %758 = vmatprep.subr.mxu0 0.0
    %759 = vmatpush1.msra.mxu0 0.0
    %760 = vmatprep.subr.mxu0 0.0
    %761 = vmatpush1.msra.mxu0 0.0
    %762 = vmatprep.subr.mxu0 0.0
    %763 = vmatpush1.msra.mxu0 0.0
    %764 = vmatprep.subr.mxu0 0.0
    %765 = vmatpush1.msra.mxu0 0.0
    %766 = vmatprep.subr.mxu0 0.0
    %767 = vmatpush1.msra.mxu0 0.0
    %768 = vmatprep.subr.mxu0 0.0
    %769 = vmatpush1.msra.mxu0 0.0
    %770 = vmatprep.subr.mxu0 0.0
    %771 = vmatpush1.msra.mxu0 0.0
    %772 = vmatprep.subr.mxu0 0.0
    %773 = vmatpush1.msra.mxu0 0.0
    %774 = vmatprep.subr.mxu0 0.0
    %775 = vmatpush1.msra.mxu0 0.0
    %776 = vmatprep.subr.mxu0 0.0
    %777 = vmatpush1.msra.mxu0 0.0
    %778 = vmatprep.subr.mxu0 0.0
    %779 = vmatpush1.msra.mxu0 0.0
    %780 = vmatprep.subr.mxu0 0.0
    %781 = vmatpush1.msra.mxu0 0.0
    %782 = vmatprep.subr.mxu0 0.0
    %783 = vmatpush1.msra.mxu0 0.0
    %784 = vmatprep.subr.mxu0 0.0
    %785 = vmatpush1.msra.mxu0 0.0
    %786 = vmatprep.subr.mxu0 0.0
    %787 = vmatpush1.msra.mxu0 0.0
    %788 = vmatprep.subr.mxu0 0.0
    %789 = vmatpush1.msra.mxu0 0.0
    %790 = vmatprep.subr.mxu0 0.0
    %791 = vmatpush1.msra.mxu0 0.0
    %792 = vmatprep.subr.mxu0 0.0
    %793 = vmatpush1.msra.mxu0 0.0
    %794 = vmatprep.subr.mxu0 0.0
    %795 = vmatpush1.msra.mxu0 0.0
    %796 = vmatprep.subr.mxu0 0.0
    %797 = vmatpush1.msra.mxu0 0.0
    %798 = vmatprep.mubr.f32.mxu0 0.0
    %v799 = vand.u32 %v596, 4294901760
    %800 = vmatmul.mubr.f32.gmra.mrb[0].mxu0 %v799
    %v801 = vpop.f32.mrb[0].mxu0
    %v802 = vadd.f32 %v681, %v801
    %v803 = vpop.f32.mrb[0].mxu0
    %804 = vmatprep.mubr.f32.mxu0 0.0
    %v805 = vand.u32 %v599, 4294901760
    %806 = vmatmul.mubr.f32.gmra.mrb[0].mxu0 %v805
    %v807 = vpop.f32.mrb[0].mxu0
    %v808 = vadd.f32 %v691, %v807
    %v809 = vpop.f32.mrb[0].mxu0
    %810 = vdwg.mxu0
    %811 = vmatprep.subr.mxu0 0.0
    %v812 = vand.u32 %v579, 4294901760
    %v813 = vsub.f32 %v579, %v812
    %814 = vmatpush1.msra.mxu0 %v813
    %815 = vmatprep.subr.mxu0 0.0
    %v816 = vand.u32 %v580, 4294901760
    %v817 = vsub.f32 %v580, %v816
    %818 = vmatpush1.msra.mxu0 %v817
    %819 = vmatprep.subr.mxu0 0.0
    %v820 = vand.u32 %v581, 4294901760
    %v821 = vsub.f32 %v581, %v820
    %822 = vmatpush1.msra.mxu0 %v821
    %823 = vmatprep.subr.mxu0 0.0
    %v824 = vand.u32 %v582, 4294901760
    %v825 = vsub.f32 %v582, %v824
    %826 = vmatpush1.msra.mxu0 %v825
    %827 = vmatprep.subr.mxu0 0.0
    %v828 = vand.u32 %v583, 4294901760
    %v829 = vsub.f32 %v583, %v828
    %830 = vmatpush1.msra.mxu0 %v829
    %831 = vmatprep.subr.mxu0 0.0
    %v832 = vand.u32 %v584, 4294901760
    %v833 = vsub.f32 %v584, %v832
    %834 = vmatpush1.msra.mxu0 %v833
    %835 = vmatprep.subr.mxu0 0.0
    %v836 = vand.u32 %v585, 4294901760
    %v837 = vsub.f32 %v585, %v836
    %838 = vmatpush1.msra.mxu0 %v837
    %839 = vmatprep.subr.mxu0 0.0
    %v840 = vand.u32 %v586, 4294901760
    %v841 = vsub.f32 %v586, %v840
    %842 = vmatpush1.msra.mxu0 %v841
    %843 = vmatprep.subr.mxu0 0.0
    %844 = vmatpush1.msra.mxu0 0.0
    %845 = vmatprep.subr.mxu0 0.0
    %846 = vmatpush1.msra.mxu0 0.0
    %847 = vmatprep.subr.mxu0 0.0
    %848 = vmatpush1.msra.mxu0 0.0
    %849 = vmatprep.subr.mxu0 0.0
    %850 = vmatpush1.msra.mxu0 0.0
    %851 = vmatprep.subr.mxu0 0.0
    %852 = vmatpush1.msra.mxu0 0.0
    %853 = vmatprep.subr.mxu0 0.0
    %854 = vmatpush1.msra.mxu0 0.0
    %855 = vmatprep.subr.mxu0 0.0
    %856 = vmatpush1.msra.mxu0 0.0
    %857 = vmatprep.subr.mxu0 0.0
    %858 = vmatpush1.msra.mxu0 0.0
    %859 = vmatprep.subr.mxu0 0.0
    %860 = vmatpush1.msra.mxu0 0.0
    %861 = vmatprep.subr.mxu0 0.0
    %862 = vmatpush1.msra.mxu0 0.0
    %863 = vmatprep.subr.mxu0 0.0
    %864 = vmatpush1.msra.mxu0 0.0
    %865 = vmatprep.subr.mxu0 0.0
    %866 = vmatpush1.msra.mxu0 0.0
    %867 = vmatprep.subr.mxu0 0.0
    %868 = vmatpush1.msra.mxu0 0.0
    %869 = vmatprep.subr.mxu0 0.0
    %870 = vmatpush1.msra.mxu0 0.0
    %871 = vmatprep.subr.mxu0 0.0
    %872 = vmatpush1.msra.mxu0 0.0
    %873 = vmatprep.subr.mxu0 0.0
    %874 = vmatpush1.msra.mxu0 0.0
    %875 = vmatprep.subr.mxu0 0.0
    %876 = vmatpush1.msra.mxu0 0.0
    %877 = vmatprep.subr.mxu0 0.0
    %878 = vmatpush1.msra.mxu0 0.0
    %879 = vmatprep.subr.mxu0 0.0
    %880 = vmatpush1.msra.mxu0 0.0
    %881 = vmatprep.subr.mxu0 0.0
    %882 = vmatpush1.msra.mxu0 0.0
    %883 = vmatprep.subr.mxu0 0.0
    %884 = vmatpush1.msra.mxu0 0.0
    %885 = vmatprep.subr.mxu0 0.0
    %886 = vmatpush1.msra.mxu0 0.0
    %887 = vmatprep.subr.mxu0 0.0
    %888 = vmatpush1.msra.mxu0 0.0
    %889 = vmatprep.subr.mxu0 0.0
    %890 = vmatpush1.msra.mxu0 0.0
    %891 = vmatprep.mubr.f32.mxu0 0.0
    %v892 = vand.u32 %v596, 4294901760
    %v893 = vsub.f32 %v596, %v892
    %894 = vmatmul.mubr.f32.gmra.mrb[0].mxu0 %v893
    %v895 = vpop.f32.mrb[0].mxu0
    %v896 = vadd.f32 %v802, %v895
    %v897 = vpop.f32.mrb[0].mxu0
    %898 = vmatprep.mubr.f32.mxu0 0.0
    %v899 = vand.u32 %v599, 4294901760
    %v900 = vsub.f32 %v599, %v899
    %901 = vmatmul.mubr.f32.gmra.mrb[0].mxu0 %v900
    %v902 = vpop.f32.mrb[0].mxu0
    %v903 = vadd.f32 %v808, %v902
    %v904 = vpop.f32.mrb[0].mxu0
    %905 = vdwg.mxu0
    %906 = vmatprep.subr.mxu0 0.0
    %v907 = vand.u32 %v579, 4294901760
    %908 = vmatpush1.msra.mxu0 %v907
    %909 = vmatprep.subr.mxu0 0.0
    %v910 = vand.u32 %v580, 4294901760
    %911 = vmatpush1.msra.mxu0 %v910
    %912 = vmatprep.subr.mxu0 0.0
    %v913 = vand.u32 %v581, 4294901760
    %914 = vmatpush1.msra.mxu0 %v913
    %915 = vmatprep.subr.mxu0 0.0
    %v916 = vand.u32 %v582, 4294901760
    %917 = vmatpush1.msra.mxu0 %v916
    %918 = vmatprep.subr.mxu0 0.0
    %v919 = vand.u32 %v583, 4294901760
    %920 = vmatpush1.msra.mxu0 %v919
    %921 = vmatprep.subr.mxu0 0.0
    %v922 = vand.u32 %v584, 4294901760
    %923 = vmatpush1.msra.mxu0 %v922
    %924 = vmatprep.subr.mxu0 0.0
    %v925 = vand.u32 %v585, 4294901760
    %926 = vmatpush1.msra.mxu0 %v925
    %927 = vmatprep.subr.mxu0 0.0
    %v928 = vand.u32 %v586, 4294901760
    %929 = vmatpush1.msra.mxu0 %v928
    %930 = vmatprep.subr.mxu0 0.0
    %931 = vmatpush1.msra.mxu0 0.0
    %932 = vmatprep.subr.mxu0 0.0
    %933 = vmatpush1.msra.mxu0 0.0
    %934 = vmatprep.subr.mxu0 0.0
    %935 = vmatpush1.msra.mxu0 0.0
    %936 = vmatprep.subr.mxu0 0.0
    %937 = vmatpush1.msra.mxu0 0.0
    %938 = vmatprep.subr.mxu0 0.0
    %939 = vmatpush1.msra.mxu0 0.0
    %940 = vmatprep.subr.mxu0 0.0
    %941 = vmatpush1.msra.mxu0 0.0
    %942 = vmatprep.subr.mxu0 0.0
    %943 = vmatpush1.msra.mxu0 0.0
    %944 = vmatprep.subr.mxu0 0.0
    %945 = vmatpush1.msra.mxu0 0.0
    %946 = vmatprep.subr.mxu0 0.0
    %947 = vmatpush1.msra.mxu0 0.0
    %948 = vmatprep.subr.mxu0 0.0
    %949 = vmatpush1.msra.mxu0 0.0
    %950 = vmatprep.subr.mxu0 0.0
    %951 = vmatpush1.msra.mxu0 0.0
    %952 = vmatprep.subr.mxu0 0.0
    %953 = vmatpush1.msra.mxu0 0.0
    %954 = vmatprep.subr.mxu0 0.0
    %955 = vmatpush1.msra.mxu0 0.0
    %956 = vmatprep.subr.mxu0 0.0
    %957 = vmatpush1.msra.mxu0 0.0
    %958 = vmatprep.subr.mxu0 0.0
    %959 = vmatpush1.msra.mxu0 0.0
    %960 = vmatprep.subr.mxu0 0.0
    %961 = vmatpush1.msra.mxu0 0.0
    %962 = vmatprep.subr.mxu0 0.0
    %963 = vmatpush1.msra.mxu0 0.0
    %964 = vmatprep.subr.mxu0 0.0
    %965 = vmatpush1.msra.mxu0 0.0
    %966 = vmatprep.subr.mxu0 0.0
    %967 = vmatpush1.msra.mxu0 0.0
    %968 = vmatprep.subr.mxu0 0.0
    %969 = vmatpush1.msra.mxu0 0.0
    %970 = vmatprep.subr.mxu0 0.0
    %971 = vmatpush1.msra.mxu0 0.0
    %972 = vmatprep.subr.mxu0 0.0
    %973 = vmatpush1.msra.mxu0 0.0
    %974 = vmatprep.subr.mxu0 0.0
    %975 = vmatpush1.msra.mxu0 0.0
    %976 = vmatprep.subr.mxu0 0.0
    %977 = vmatpush1.msra.mxu0 0.0
    %978 = vmatprep.mubr.f32.mxu0 0.0
    %v979 = vand.u32 %v596, 4294901760
    %v980 = vsub.f32 %v596, %v979
    %v981 = vand.u32 %v980, 4294901760
    %982 = vmatmul.mubr.f32.gmra.mrb[0].mxu0 %v981
    %v983 = vpop.f32.mrb[0].mxu0
    %v984 = vadd.f32 %v896, %v983
    %v985 = vpop.f32.mrb[0].mxu0
    %986 = vmatprep.mubr.f32.mxu0 0.0
    %v987 = vand.u32 %v599, 4294901760
    %v988 = vsub.f32 %v599, %v987
    %v989 = vand.u32 %v988, 4294901760
    %990 = vmatmul.mubr.f32.gmra.mrb[0].mxu0 %v989
    %v991 = vpop.f32.mrb[0].mxu0
    %v992 = vadd.f32 %v903, %v991
    %v993 = vpop.f32.mrb[0].mxu0
    %994 = vdwg.mxu0
    %995 = vmatprep.subr.mxu0 0.0
    %v996 = vand.u32 %v579, 4294901760
    %v997 = vsub.f32 %v579, %v996
    %v998 = vand.u32 %v997, 4294901760
    %999 = vmatpush1.msra.mxu0 %v998
    %1000 = vmatprep.subr.mxu0 0.0
    %v1001 = vand.u32 %v580, 4294901760
    %v1002 = vsub.f32 %v580, %v1001
    %v1003 = vand.u32 %v1002, 4294901760
    %1004 = vmatpush1.msra.mxu0 %v1003
    %1005 = vmatprep.subr.mxu0 0.0
    %v1006 = vand.u32 %v581, 4294901760
    %v1007 = vsub.f32 %v581, %v1006
    %v1008 = vand.u32 %v1007, 4294901760
    %1009 = vmatpush1.msra.mxu0 %v1008
    %1010 = vmatprep.subr.mxu0 0.0
    %v1011 = vand.u32 %v582, 4294901760
    %v1012 = vsub.f32 %v582, %v1011
    %v1013 = vand.u32 %v1012, 4294901760
    %1014 = vmatpush1.msra.mxu0 %v1013
    %1015 = vmatprep.subr.mxu0 0.0
    %v1016 = vand.u32 %v583, 4294901760
    %v1017 = vsub.f32 %v583, %v1016
    %v1018 = vand.u32 %v1017, 4294901760
    %1019 = vmatpush1.msra.mxu0 %v1018
    %1020 = vmatprep.subr.mxu0 0.0
    %v1021 = vand.u32 %v584, 4294901760
    %v1022 = vsub.f32 %v584, %v1021
    %v1023 = vand.u32 %v1022, 4294901760
    %1024 = vmatpush1.msra.mxu0 %v1023
    %1025 = vmatprep.subr.mxu0 0.0
    %v1026 = vand.u32 %v585, 4294901760
    %v1027 = vsub.f32 %v585, %v1026
    %v1028 = vand.u32 %v1027, 4294901760
    %1029 = vmatpush1.msra.mxu0 %v1028
    %1030 = vmatprep.subr.mxu0 0.0
    %v1031 = vand.u32 %v586, 4294901760
    %v1032 = vsub.f32 %v586, %v1031
    %v1033 = vand.u32 %v1032, 4294901760
    %1034 = vmatpush1.msra.mxu0 %v1033
    %1035 = vmatprep.subr.mxu0 0.0
    %1036 = vmatpush1.msra.mxu0 0.0
    %1037 = vmatprep.subr.mxu0 0.0
    %1038 = vmatpush1.msra.mxu0 0.0
    %1039 = vmatprep.subr.mxu0 0.0
    %1040 = vmatpush1.msra.mxu0 0.0
    %1041 = vmatprep.subr.mxu0 0.0
    %1042 = vmatpush1.msra.mxu0 0.0
    %1043 = vmatprep.subr.mxu0 0.0
    %1044 = vmatpush1.msra.mxu0 0.0
    %1045 = vmatprep.subr.mxu0 0.0
    %1046 = vmatpush1.msra.mxu0 0.0
    %1047 = vmatprep.subr.mxu0 0.0
    %1048 = vmatpush1.msra.mxu0 0.0
    %1049 = vmatprep.subr.mxu0 0.0
    %1050 = vmatpush1.msra.mxu0 0.0
    %1051 = vmatprep.subr.mxu0 0.0
    %1052 = vmatpush1.msra.mxu0 0.0
    %1053 = vmatprep.subr.mxu0 0.0
    %1054 = vmatpush1.msra.mxu0 0.0
    %1055 = vmatprep.subr.mxu0 0.0
    %1056 = vmatpush1.msra.mxu0 0.0
    %1057 = vmatprep.subr.mxu0 0.0
    %1058 = vmatpush1.msra.mxu0 0.0
    %1059 = vmatprep.subr.mxu0 0.0
    %1060 = vmatpush1.msra.mxu0 0.0
    %1061 = vmatprep.subr.mxu0 0.0
    %1062 = vmatpush1.msra.mxu0 0.0
    %1063 = vmatprep.subr.mxu0 0.0
    %1064 = vmatpush1.msra.mxu0 0.0
    %1065 = vmatprep.subr.mxu0 0.0
    %1066 = vmatpush1.msra.mxu0 0.0
    %1067 = vmatprep.subr.mxu0 0.0
    %1068 = vmatpush1.msra.mxu0 0.0
    %1069 = vmatprep.subr.mxu0 0.0
    %1070 = vmatpush1.msra.mxu0 0.0
    %1071 = vmatprep.subr.mxu0 0.0
    %1072 = vmatpush1.msra.mxu0 0.0
    %1073 = vmatprep.subr.mxu0 0.0
    %1074 = vmatpush1.msra.mxu0 0.0
    %1075 = vmatprep.subr.mxu0 0.0
    %1076 = vmatpush1.msra.mxu0 0.0
    %1077 = vmatprep.subr.mxu0 0.0
    %1078 = vmatpush1.msra.mxu0 0.0
    %1079 = vmatprep.subr.mxu0 0.0
    %1080 = vmatpush1.msra.mxu0 0.0
    %1081 = vmatprep.subr.mxu0 0.0
    %1082 = vmatpush1.msra.mxu0 0.0
    %1083 = vmatprep.mubr.f32.mxu0 0.0
    %v1084 = vand.u32 %v596, 4294901760
    %1085 = vmatmul.mubr.f32.gmra.mrb[0].mxu0 %v1084
    %v1086 = vpop.f32.mrb[0].mxu0
    %v1087 = vadd.f32 %v984, %v1086
    %v1088 = vpop.f32.mrb[0].mxu0
    %1089 = vmatprep.mubr.f32.mxu0 0.0
    %v1090 = vand.u32 %v599, 4294901760
    %1091 = vmatmul.mubr.f32.gmra.mrb[0].mxu0 %v1090
    %v1092 = vpop.f32.mrb[0].mxu0
    %v1093 = vadd.f32 %v992, %v1092
    %v1094 = vpop.f32.mrb[0].mxu0
    %1095 = vdwg.mxu0
    %1096 = vmatprep.subr.mxu0 0.0
    %v1097 = vand.u32 %v579, 4294901760
    %1098 = vmatpush1.msra.mxu0 %v1097
    %1099 = vmatprep.subr.mxu0 0.0
    %v1100 = vand.u32 %v580, 4294901760
    %1101 = vmatpush1.msra.mxu0 %v1100
    %1102 = vmatprep.subr.mxu0 0.0
    %v1103 = vand.u32 %v581, 4294901760
    %1104 = vmatpush1.msra.mxu0 %v1103
    %1105 = vmatprep.subr.mxu0 0.0
    %v1106 = vand.u32 %v582, 4294901760
    %1107 = vmatpush1.msra.mxu0 %v1106
    %1108 = vmatprep.subr.mxu0 0.0
    %v1109 = vand.u32 %v583, 4294901760
    %1110 = vmatpush1.msra.mxu0 %v1109
    %1111 = vmatprep.subr.mxu0 0.0
    %v1112 = vand.u32 %v584, 4294901760
    %1113 = vmatpush1.msra.mxu0 %v1112
    %1114 = vmatprep.subr.mxu0 0.0
    %v1115 = vand.u32 %v585, 4294901760
    %1116 = vmatpush1.msra.mxu0 %v1115
    %1117 = vmatprep.subr.mxu0 0.0
    %v1118 = vand.u32 %v586, 4294901760
    %1119 = vmatpush1.msra.mxu0 %v1118
    %1120 = vmatprep.subr.mxu0 0.0
    %1121 = vmatpush1.msra.mxu0 0.0
    %1122 = vmatprep.subr.mxu0 0.0
    %1123 = vmatpush1.msra.mxu0 0.0
    %1124 = vmatprep.subr.mxu0 0.0
    %1125 = vmatpush1.msra.mxu0 0.0
    %1126 = vmatprep.subr.mxu0 0.0
    %1127 = vmatpush1.msra.mxu0 0.0
    %1128 = vmatprep.subr.mxu0 0.0
    %1129 = vmatpush1.msra.mxu0 0.0
    %1130 = vmatprep.subr.mxu0 0.0
    %1131 = vmatpush1.msra.mxu0 0.0
    %1132 = vmatprep.subr.mxu0 0.0
    %1133 = vmatpush1.msra.mxu0 0.0
    %1134 = vmatprep.subr.mxu0 0.0
    %1135 = vmatpush1.msra.mxu0 0.0
    %1136 = vmatprep.subr.mxu0 0.0
    %1137 = vmatpush1.msra.mxu0 0.0
    %1138 = vmatprep.subr.mxu0 0.0
    %1139 = vmatpush1.msra.mxu0 0.0
    %1140 = vmatprep.subr.mxu0 0.0
    %1141 = vmatpush1.msra.mxu0 0.0
    %1142 = vmatprep.subr.mxu0 0.0
    %1143 = vmatpush1.msra.mxu0 0.0
    %1144 = vmatprep.subr.mxu0 0.0
    %1145 = vmatpush1.msra.mxu0 0.0
    %1146 = vmatprep.subr.mxu0 0.0
    %1147 = vmatpush1.msra.mxu0 0.0
    %1148 = vmatprep.subr.mxu0 0.0
    %1149 = vmatpush1.msra.mxu0 0.0
    %1150 = vmatprep.subr.mxu0 0.0
    %1151 = vmatpush1.msra.mxu0 0.0
    %1152 = vmatprep.subr.mxu0 0.0
    %1153 = vmatpush1.msra.mxu0 0.0
    %1154 = vmatprep.subr.mxu0 0.0
    %1155 = vmatpush1.msra.mxu0 0.0
    %1156 = vmatprep.subr.mxu0 0.0
    %1157 = vmatpush1.msra.mxu0 0.0
    %1158 = vmatprep.subr.mxu0 0.0
    %1159 = vmatpush1.msra.mxu0 0.0
    %1160 = vmatprep.subr.mxu0 0.0
    %1161 = vmatpush1.msra.mxu0 0.0
    %1162 = vmatprep.subr.mxu0 0.0
    %1163 = vmatpush1.msra.mxu0 0.0
    %1164 = vmatprep.subr.mxu0 0.0
    %1165 = vmatpush1.msra.mxu0 0.0
    %1166 = vmatprep.subr.mxu0 0.0
    %1167 = vmatpush1.msra.mxu0 0.0
    %1168 = vmatprep.mubr.f32.mxu0 0.0
    %v1169 = vand.u32 %v596, 4294901760
    %1170 = vmatmul.mubr.f32.gmra.mrb[0].mxu0 %v1169
    %v1171 = vpop.f32.mrb[0].mxu0
    %v1172 = vadd.f32 %v1087, %v1171
    %v1173 = vpop.f32.mrb[0].mxu0
    %1174 = vmatprep.mubr.f32.mxu0 0.0
    %v1175 = vand.u32 %v599, 4294901760
    %1176 = vmatmul.mubr.f32.gmra.mrb[0].mxu0 %v1175
    %v1177 = vpop.f32.mrb[0].mxu0
    %v1178 = vadd.f32 %v1093, %v1177
    %v1179 = vpop.f32.mrb[0].mxu0
    %1180 = vdwg.mxu0
    %1181 = vst.msk [vmem:[#allocation2] sm:$0xff] %vm34, %v1172
    %1182 = vst.msk [vmem:[#allocation2 + $0x8] sm:$0xff] %vm34, %v1178
    // Predicated region
    $region22: #{tpu_custom_call.1} parent=1 // pred_check
      _
    $region23: #{tpu_custom_call.1} parent=1 // pred_check_branch
      %1184 = sbr.rel (0) target = $region25
    $region24: #{tpu_custom_call.1} parent=1 // pred_region
      %s1186 = ssub.s32 256, 256
      %1187 = vsyncadd [#allocation3], %s1186
      %s1188 = sshll.u32 [#allocation2], 4
      %s1189 = int_to_ptr.vmem [resolvable:$true] %s1188
      %1194 = dma.vmem_to_hbm [thread:$0]  %s1189, 256, %s5, [#allocation3], 128, 128, 8
    $region25: #{tpu_custom_call.1} parent=1 // pred_fallthru
      _
    // Predicated region
    $region26: #{tpu_custom_call.1} parent=1 // pred_check
      _
    $region27: #{tpu_custom_call.1} parent=1 // pred_check_branch
      %1196 = sbr.rel (0) target = $region29
    $region28: #{tpu_custom_call.1} parent=1 // pred_region
      %1197 = dma.done [#allocation3], 256
    $region29: #{tpu_custom_call.1} parent=1 // pred_fallthru
      _
    %1198 = vsyncpa [#allocation3], 1

// kernel: tpu_custom_call.1
$region0: #{tpu_custom_call.1}
  #allocation0 [shape = 'u32[]', space=smem, size = 0x4, offset = 0x4, fixed_abs, tag = 'smem constant byte address 0x4 - core index']
  #allocation1 [shape = 'u32[144,128]{1,0:T(1,128)}', space=vmem, size = 0x12000, scoped, tag = 'internal scratch']
  %s0 = inlined_call_operand.vmem [shape: f32[16,32], index: 0, kind: input, shape index: {}]
  %s1 = inlined_call_operand.vmem [shape: f32[32,64], index: 1, kind: input, shape index: {}]
  %s2 = inlined_call_operand.vmem [shape: f32[1,64], index: 2, kind: input, shape index: {}]
  %s3 = inlined_call_operand.vmem [shape: f32[64,32], index: 3, kind: input, shape index: {}]
  %s4 = inlined_call_operand.vmem [shape: f32[1,32], index: 4, kind: input, shape index: {}]
  %s5 = inlined_call_operand.hbm [shape: f32[16,32], index: 5, kind: output, shape index: {}]
  %s6 = sld [smem:[#allocation0]]
  $region30: #{tpu_custom_call.1} parent=0
    _
  %s8 = ssub.s32 1, %s6
  %s9 = scalar_select 0, %s8, %s6
  $region1: #{tpu_custom_call.1} parent=0
    #allocation2 [shape = 'u8[8192]{0}', space=vmem, size = 0x2000, scoped, tag = 'output window, operand 0, single buffered']
    #allocation3 [shape = 's32[1]{0}', space=sflag, size = 0x4, scoped, tag = 'scoped memory for tpu_custom_call.1']
    %10 = vsyncpa [#allocation3], 0
    // Predicated region
    $region2: #{tpu_custom_call.1} parent=1 // pred_check
      _
    $region3: #{tpu_custom_call.1} parent=1 // pred_check_branch
      %12 = sbr.rel (0) target = $region5
    $region4: #{tpu_custom_call.1} parent=1 // pred_region
      _
    $region5: #{tpu_custom_call.1} parent=1 // pred_fallthru
      _
    // Predicated region
    $region6: #{tpu_custom_call.1} parent=1 // pred_check
      _
    $region7: #{tpu_custom_call.1} parent=1 // pred_check_branch
      %14 = sbr.rel (0) target = $region9
    $region8: #{tpu_custom_call.1} parent=1 // pred_region
      _
    $region9: #{tpu_custom_call.1} parent=1 // pred_fallthru
      _
    // Predicated region
    $region10: #{tpu_custom_call.1} parent=1 // pred_check
      _
    $region11: #{tpu_custom_call.1} parent=1 // pred_check_branch
      %16 = sbr.rel (0) target = $region13
    $region12: #{tpu_custom_call.1} parent=1 // pred_region
      _
    $region13: #{tpu_custom_call.1} parent=1 // pred_fallthru
      _
    // Predicated region
    $region14: #{tpu_custom_call.1} parent=1 // pred_check
      _
    $region15: #{tpu_custom_call.1} parent=1 // pred_check_branch
      %18 = sbr.rel (0) target = $region17
    $region16: #{tpu_custom_call.1} parent=1 // pred_region
      _
    $region17: #{tpu_custom_call.1} parent=1 // pred_fallthru
      _
    // Predicated region
    $region18: #{tpu_custom_call.1} parent=1 // pred_check
      _
    $region19: #{tpu_custom_call.1} parent=1 // pred_check_branch
      %20 = sbr.rel (0) target = $region21
    $region20: #{tpu_custom_call.1} parent=1 // pred_region
      _
    $region21: #{tpu_custom_call.1} parent=1 // pred_fallthru
      _
    %v21 = vld [vmem:[%s0] sm:$0xff]
    %v22 = vld [vmem:[%s0 + $0x8] sm:$0xff]
    %v23 = vld [vmem:[%s1] sm:$0xff]
    %v24 = vld [vmem:[%s1 + $0x8] sm:$0xff]
    %v25 = vld [vmem:[%s1 + $0x10] sm:$0xff]
    %v26 = vld [vmem:[%s1 + $0x18] sm:$0xff]
    %v27 = vld [vmem:[%s2] sm:$0x1]
    %v29 = vlaneseq
    %v30 = vshrl.u32 %v29, 7
    %v31 = vsub.s32 0, %v30
    %v32 = vrot.slane %v27, %v31
    %vm34 = vcmask 261120
    %v36 = vsel %vm34, %v21, 0
    %v39 = vsel %vm34, %v22, 0
    %41 = vmatprep.subr.mxu0 0.0
    %v42 = vand.u32 %v23, 4294901760
    %43 = vmatpush1.msra.mxu0 %v42
    %44 = vmatprep.subr.mxu0 0.0
    %v45 = vand.u32 %v24, 4294901760
    %46 = vmatpush1.msra.mxu0 %v45
    %47 = vmatprep.subr.mxu0 0.0
    %v48 = vand.u32 %v25, 4294901760
    %49 = vmatpush1.msra.mxu0 %v48
    %50 = vmatprep.subr.mxu0 0.0
    %v51 = vand.u32 %v26, 4294901760
    %52 = vmatpush1.msra.mxu0 %v51
    %53 = vmatprep.subr.mxu0 0.0
    %54 = vmatpush1.msra.mxu0 0.0
    %55 = vmatprep.subr.mxu0 0.0
    %56 = vmatpush1.msra.mxu0 0.0
    %57 = vmatprep.subr.mxu0 0.0
    %58 = vmatpush1.msra.mxu0 0.0
    %59 = vmatprep.subr.mxu0 0.0
    %60 = vmatpush1.msra.mxu0 0.0
    %61 = vmatprep.subr.mxu0 0.0
    %62 = vmatpush1.msra.mxu0 0.0
    %63 = vmatprep.subr.mxu0 0.0
    %64 = vmatpush1.msra.mxu0 0.0
    %65 = vmatprep.subr.mxu0 0.0
    %66 = vmatpush1.msra.mxu0 0.0
    %67 = vmatprep.subr.mxu0 0.0
    %68 = vmatpush1.msra.mxu0 0.0
    %69 = vmatprep.subr.mxu0 0.0
    %70 = vmatpush1.msra.mxu0 0.0
    %71 = vmatprep.subr.mxu0 0.0
    %72 = vmatpush1.msra.mxu0 0.0
    %73 = vmatprep.subr.mxu0 0.0
    %74 = vmatpush1.msra.mxu0 0.0
    %75 = vmatprep.subr.mxu0 0.0
    %76 = vmatpush1.msra.mxu0 0.0
    %77 = vmatprep.subr.mxu0 0.0
    %78 = vmatpush1.msra.mxu0 0.0
    %79 = vmatprep.subr.mxu0 0.0
    %80 = vmatpush1.msra.mxu0 0.0
    %81 = vmatprep.subr.mxu0 0.0
    %82 = vmatpush1.msra.mxu0 0.0
    %83 = vmatprep.subr.mxu0 0.0
    %84 = vmatpush1.msra.mxu0 0.0
    %85 = vmatprep.subr.mxu0 0.0
    %86 = vmatpush1.msra.mxu0 0.0
    %87 = vmatprep.subr.mxu0 0.0
    %88 = vmatpush1.msra.mxu0 0.0
    %89 = vmatprep.subr.mxu0 0.0
    %90 = vmatpush1.msra.mxu0 0.0
    %91 = vmatprep.subr.mxu0 0.0
    %92 = vmatpush1.msra.mxu0 0.0
    %93 = vmatprep.subr.mxu0 0.0
    %94 = vmatpush1.msra.mxu0 0.0
    %95 = vmatprep.subr.mxu0 0.0
    %96 = vmatpush1.msra.mxu0 0.0
    %97 = vmatprep.subr.mxu0 0.0
    %98 = vmatpush1.msra.mxu0 0.0
    %99 = vmatprep.subr.mxu0 0.0
    %100 = vmatpush1.msra.mxu0 0.0
    %101 = vmatprep.subr.mxu0 0.0
    %102 = vmatpush1.msra.mxu0 0.0
    %103 = vmatprep.subr.mxu0 0.0
    %104 = vmatpush1.msra.mxu0 0.0
    %105 = vmatprep.subr.mxu0 0.0
    %106 = vmatpush1.msra.mxu0 0.0
    %107 = vmatprep.subr.mxu0 0.0
    %108 = vmatpush1.msra.mxu0 0.0
    %109 = vmatprep.mubr.f32.mxu0 0.0
    %v110 = vand.u32 %v36, 4294901760
    %v111 = vsub.f32 %v36, %v110
    %v112 = vand.u32 %v111, 4294901760
    %v113 = vsub.f32 %v111, %v112
    %v114 = vand.u32 %v113, 4294901760
    %115 = vmatmul.mubr.f32.gmra.mrb[0].mxu0 %v114
    %v116 = vpop.f32.mrb[0].mxu0
    %v117 = vadd.f32 %v32, %v116
    %v118 = vpop.f32.mrb[0].mxu0
    %119 = vmatprep.mubr.f32.mxu0 0.0
    %v120 = vand.u32 %v39, 4294901760
    %v121 = vsub.f32 %v39, %v120
    %v122 = vand.u32 %v121, 4294901760
    %v123 = vsub.f32 %v121, %v122
    %v124 = vand.u32 %v123, 4294901760
    %125 = vmatmul.mubr.f32.gmra.mrb[0].mxu0 %v124
    %v126 = vpop.f32.mrb[0].mxu0
    %v127 = vadd.f32 %v32, %v126
    %v128 = vpop.f32.mrb[0].mxu0
    %129 = vdwg.mxu0
    %130 = vmatprep.subr.mxu0 0.0
    %v131 = vand.u32 %v23, 4294901760
    %v132 = vsub.f32 %v23, %v131
    %v133 = vand.u32 %v132, 4294901760
    %v134 = vsub.f32 %v132, %v133
    %v135 = vand.u32 %v134, 4294901760
    %136 = vmatpush1.msra.mxu0 %v135
    %137 = vmatprep.subr.mxu0 0.0
    %v138 = vand.u32 %v24, 4294901760
    %v139 = vsub.f32 %v24, %v138
    %v140 = vand.u32 %v139, 4294901760
    %v141 = vsub.f32 %v139, %v140
    %v142 = vand.u32 %v141, 4294901760
    %143 = vmatpush1.msra.mxu0 %v142
    %144 = vmatprep.subr.mxu0 0.0
    %v145 = vand.u32 %v25, 4294901760
    %v146 = vsub.f32 %v25, %v145
    %v147 = vand.u32 %v146, 4294901760
    %v148 = vsub.f32 %v146, %v147
    %v149 = vand.u32 %v148, 4294901760
    %150 = vmatpush1.msra.mxu0 %v149
    %151 = vmatprep.subr.mxu0 0.0
    %v152 = vand.u32 %v26, 4294901760
    %v153 = vsub.f32 %v26, %v152
    %v154 = vand.u32 %v153, 4294901760
    %v155 = vsub.f32 %v153, %v154
    %v156 = vand.u32 %v155, 4294901760
    %157 = vmatpush1.msra.mxu0 %v156
    %158 = vmatprep.subr.mxu0 0.0
    %159 = vmatpush1.msra.mxu0 0.0
    %160 = vmatprep.subr.mxu0 0.0
    %161 = vmatpush1.msra.mxu0 0.0
    %162 = vmatprep.subr.mxu0 0.0
    %163 = vmatpush1.msra.mxu0 0.0
    %164 = vmatprep.subr.mxu0 0.0
    %165 = vmatpush1.msra.mxu0 0.0
    %166 = vmatprep.subr.mxu0 0.0
    %167 = vmatpush1.msra.mxu0 0.0
    %168 = vmatprep.subr.mxu0 0.0
    %169 = vmatpush1.msra.mxu0 0.0
    %170 = vmatprep.subr.mxu0 0.0
    %171 = vmatpush1.msra.mxu0 0.0
    %172 = vmatprep.subr.mxu0 0.0
    %173 = vmatpush1.msra.mxu0 0.0
    %174 = vmatprep.subr.mxu0 0.0
    %175 = vmatpush1.msra.mxu0 0.0
    %176 = vmatprep.subr.mxu0 0.0
    %177 = vmatpush1.msra.mxu0 0.0
    %178 = vmatprep.subr.mxu0 0.0
    %179 = vmatpush1.msra.mxu0 0.0
    %180 = vmatprep.subr.mxu0 0.0
    %181 = vmatpush1.msra.mxu0 0.0
    %182 = vmatprep.subr.mxu0 0.0
    %183 = vmatpush1.msra.mxu0 0.0
    %184 = vmatprep.subr.mxu0 0.0
    %185 = vmatpush1.msra.mxu0 0.0
    %186 = vmatprep.subr.mxu0 0.0
    %187 = vmatpush1.msra.mxu0 0.0
    %188 = vmatprep.subr.mxu0 0.0
    %189 = vmatpush1.msra.mxu0 0.0
    %190 = vmatprep.subr.mxu0 0.0
    %191 = vmatpush1.msra.mxu0 0.0
    %192 = vmatprep.subr.mxu0 0.0
    %193 = vmatpush1.msra.mxu0 0.0
    %194 = vmatprep.subr.mxu0 0.0
    %195 = vmatpush1.msra.mxu0 0.0
    %196 = vmatprep.subr.mxu0 0.0
    %197 = vmatpush1.msra.mxu0 0.0
    %198 = vmatprep.subr.mxu0 0.0
    %199 = vmatpush1.msra.mxu0 0.0
    %200 = vmatprep.subr.mxu0 0.0
    %201 = vmatpush1.msra.mxu0 0.0
    %202 = vmatprep.subr.mxu0 0.0
    %203 = vmatpush1.msra.mxu0 0.0
    %204 = vmatprep.subr.mxu0 0.0
    %205 = vmatpush1.msra.mxu0 0.0
    %206 = vmatprep.subr.mxu0 0.0
    %207 = vmatpush1.msra.mxu0 0.0
    %208 = vmatprep.subr.mxu0 0.0
    %209 = vmatpush1.msra.mxu0 0.0
    %210 = vmatprep.subr.mxu0 0.0
    %211 = vmatpush1.msra.mxu0 0.0
    %212 = vmatprep.subr.mxu0 0.0
    %213 = vmatpush1.msra.mxu0 0.0
    %214 = vmatprep.mubr.f32.mxu0 0.0
    %v215 = vand.u32 %v36, 4294901760
    %216 = vmatmul.mubr.f32.gmra.mrb[0].mxu0 %v215
    %v217 = vpop.f32.mrb[0].mxu0
    %v218 = vadd.f32 %v117, %v217
    %v219 = vpop.f32.mrb[0].mxu0
    %220 = vmatprep.mubr.f32.mxu0 0.0
    %v221 = vand.u32 %v39, 4294901760
    %222 = vmatmul.mubr.f32.gmra.mrb[0].mxu0 %v221
    %v223 = vpop.f32.mrb[0].mxu0
    %v224 = vadd.f32 %v127, %v223
    %v225 = vpop.f32.mrb[0].mxu0
    %226 = vdwg.mxu0
    %227 = vmatprep.subr.mxu0 0.0
    %v228 = vand.u32 %v23, 4294901760
    %v229 = vsub.f32 %v23, %v228
    %230 = vmatpush1.msra.mxu0 %v229
    %231 = vmatprep.subr.mxu0 0.0
    %v232 = vand.u32 %v24, 4294901760
    %v233 = vsub.f32 %v24, %v232
    %234 = vmatpush1.msra.mxu0 %v233
    %235 = vmatprep.subr.mxu0 0.0
    %v236 = vand.u32 %v25, 4294901760
    %v237 = vsub.f32 %v25, %v236
    %238 = vmatpush1.msra.mxu0 %v237
    %239 = vmatprep.subr.mxu0 0.0
    %v240 = vand.u32 %v26, 4294901760
    %v241 = vsub.f32 %v26, %v240
    %242 = vmatpush1.msra.mxu0 %v241
    %243 = vmatprep.subr.mxu0 0.0
    %244 = vmatpush1.msra.mxu0 0.0
    %245 = vmatprep.subr.mxu0 0.0
    %246 = vmatpush1.msra.mxu0 0.0
    %247 = vmatprep.subr.mxu0 0.0
    %248 = vmatpush1.msra.mxu0 0.0
    %249 = vmatprep.subr.mxu0 0.0
    %250 = vmatpush1.msra.mxu0 0.0
    %251 = vmatprep.subr.mxu0 0.0
    %252 = vmatpush1.msra.mxu0 0.0
    %253 = vmatprep.subr.mxu0 0.0
    %254 = vmatpush1.msra.mxu0 0.0
    %255 = vmatprep.subr.mxu0 0.0
    %256 = vmatpush1.msra.mxu0 0.0
    %257 = vmatprep.subr.mxu0 0.0
    %258 = vmatpush1.msra.mxu0 0.0
    %259 = vmatprep.subr.mxu0 0.0
    %260 = vmatpush1.msra.mxu0 0.0
    %261 = vmatprep.subr.mxu0 0.0
    %262 = vmatpush1.msra.mxu0 0.0
    %263 = vmatprep.subr.mxu0 0.0
    %264 = vmatpush1.msra.mxu0 0.0
    %265 = vmatprep.subr.mxu0 0.0
    %266 = vmatpush1.msra.mxu0 0.0
    %267 = vmatprep.subr.mxu0 0.0
    %268 = vmatpush1.msra.mxu0 0.0
    %269 = vmatprep.subr.mxu0 0.0
    %270 = vmatpush1.msra.mxu0 0.0
    %271 = vmatprep.subr.mxu0 0.0
    %272 = vmatpush1.msra.mxu0 0.0
    %273 = vmatprep.subr.mxu0 0.0
    %274 = vmatpush1.msra.mxu0 0.0
    %275 = vmatprep.subr.mxu0 0.0
    %276 = vmatpush1.msra.mxu0 0.0
    %277 = vmatprep.subr.mxu0 0.0
    %278 = vmatpush1.msra.mxu0 0.0
    %279 = vmatprep.subr.mxu0 0.0
    %280 = vmatpush1.msra.mxu0 0.0
    %281 = vmatprep.subr.mxu0 0.0
    %282 = vmatpush1.msra.mxu0 0.0
    %283 = vmatprep.subr.mxu0 0.0
    %284 = vmatpush1.msra.mxu0 0.0
    %285 = vmatprep.subr.mxu0 0.0
    %286 = vmatpush1.msra.mxu0 0.0
    %287 = vmatprep.subr.mxu0 0.0
    %288 = vmatpush1.msra.mxu0 0.0
    %289 = vmatprep.subr.mxu0 0.0
    %290 = vmatpush1.msra.mxu0 0.0
    %291 = vmatprep.subr.mxu0 0.0
    %292 = vmatpush1.msra.mxu0 0.0
    %293 = vmatprep.subr.mxu0 0.0
    %294 = vmatpush1.msra.mxu0 0.0
    %295 = vmatprep.subr.mxu0 0.0
    %296 = vmatpush1.msra.mxu0 0.0
    %297 = vmatprep.subr.mxu0 0.0
    %298 = vmatpush1.msra.mxu0 0.0
    %299 = vmatprep.mubr.f32.mxu0 0.0
    %v300 = vand.u32 %v36, 4294901760
    %v301 = vsub.f32 %v36, %v300
    %302 = vmatmul.mubr.f32.gmra.mrb[0].mxu0 %v301
    %v303 = vpop.f32.mrb[0].mxu0
    %v304 = vadd.f32 %v218, %v303
    %v305 = vpop.f32.mrb[0].mxu0
    %306 = vmatprep.mubr.f32.mxu0 0.0
    %v307 = vand.u32 %v39, 4294901760
    %v308 = vsub.f32 %v39, %v307
    %309 = vmatmul.mubr.f32.gmra.mrb[0].mxu0 %v308
    %v310 = vpop.f32.mrb[0].mxu0
    %v311 = vadd.f32 %v224, %v310
    %v312 = vpop.f32.mrb[0].mxu0
    %313 = vdwg.mxu0
    %314 = vmatprep.subr.mxu0 0.0
    %v315 = vand.u32 %v23, 4294901760
    %316 = vmatpush1.msra.mxu0 %v315
    %317 = vmatprep.subr.mxu0 0.0
    %v318 = vand.u32 %v24, 4294901760
    %319 = vmatpush1.msra.mxu0 %v318
    %320 = vmatprep.subr.mxu0 0.0
    %v321 = vand.u32 %v25, 4294901760
    %322 = vmatpush1.msra.mxu0 %v321
    %323 = vmatprep.subr.mxu0 0.0
    %v324 = vand.u32 %v26, 4294901760
    %325 = vmatpush1.msra.mxu0 %v324
    %326 = vmatprep.subr.mxu0 0.0
    %327 = vmatpush1.msra.mxu0 0.0
    %328 = vmatprep.subr.mxu0 0.0
    %329 = vmatpush1.msra.mxu0 0.0
    %330 = vmatprep.subr.mxu0 0.0
    %331 = vmatpush1.msra.mxu0 0.0
    %332 = vmatprep.subr.mxu0 0.0
    %333 = vmatpush1.msra.mxu0 0.0
    %334 = vmatprep.subr.mxu0 0.0
    %335 = vmatpush1.msra.mxu0 0.0
    %336 = vmatprep.subr.mxu0 0.0
    %337 = vmatpush1.msra.mxu0 0.0
    %338 = vmatprep.subr.mxu0 0.0
    %339 = vmatpush1.msra.mxu0 0.0
    %340 = vmatprep.subr.mxu0 0.0
    %341 = vmatpush1.msra.mxu0 0.0
    %342 = vmatprep.subr.mxu0 0.0
    %343 = vmatpush1.msra.mxu0 0.0
    %344 = vmatprep.subr.mxu0 0.0
    %345 = vmatpush1.msra.mxu0 0.0
    %346 = vmatprep.subr.mxu0 0.0
    %347 = vmatpush1.msra.mxu0 0.0
    %348 = vmatprep.subr.mxu0 0.0
    %349 = vmatpush1.msra.mxu0 0.0
    %350 = vmatprep.subr.mxu0 0.0
    %351 = vmatpush1.msra.mxu0 0.0
    %352 = vmatprep.subr.mxu0 0.0
    %353 = vmatpush1.msra.mxu0 0.0
    %354 = vmatprep.subr.mxu0 0.0
    %355 = vmatpush1.msra.mxu0 0.0
    %356 = vmatprep.subr.mxu0 0.0
    %357 = vmatpush1.msra.mxu0 0.0
    %358 = vmatprep.subr.mxu0 0.0
    %359 = vmatpush1.msra.mxu0 0.0
    %360 = vmatprep.subr.mxu0 0.0
    %361 = vmatpush1.msra.mxu0 0.0
    %362 = vmatprep.subr.mxu0 0.0
    %363 = vmatpush1.msra.mxu0 0.0
    %364 = vmatprep.subr.mxu0 0.0
    %365 = vmatpush1.msra.mxu0 0.0
    %366 = vmatprep.subr.mxu0 0.0
    %367 = vmatpush1.msra.mxu0 0.0
    %368 = vmatprep.subr.mxu0 0.0
    %369 = vmatpush1.msra.mxu0 0.0
    %370 = vmatprep.subr.mxu0 0.0
    %371 = vmatpush1.msra.mxu0 0.0
    %372 = vmatprep.subr.mxu0 0.0
    %373 = vmatpush1.msra.mxu0 0.0
    %374 = vmatprep.subr.mxu0 0.0
    %375 = vmatpush1.msra.mxu0 0.0
    %376 = vmatprep.subr.mxu0 0.0
    %377 = vmatpush1.msra.mxu0 0.0
    %378 = vmatprep.subr.mxu0 0.0
    %379 = vmatpush1.msra.mxu0 0.0
    %380 = vmatprep.subr.mxu0 0.0
    %381 = vmatpush1.msra.mxu0 0.0
    %382 = vmatprep.mubr.f32.mxu0 0.0
    %v383 = vand.u32 %v36, 4294901760
    %v384 = vsub.f32 %v36, %v383
    %v385 = vand.u32 %v384, 4294901760
    %386 = vmatmul.mubr.f32.gmra.mrb[0].mxu0 %v385
    %v387 = vpop.f32.mrb[0].mxu0
    %v388 = vadd.f32 %v304, %v387
    %v389 = vpop.f32.mrb[0].mxu0
    %390 = vmatprep.mubr.f32.mxu0 0.0
    %v391 = vand.u32 %v39, 4294901760
    %v392 = vsub.f32 %v39, %v391
    %v393 = vand.u32 %v392, 4294901760
    %394 = vmatmul.mubr.f32.gmra.mrb[0].mxu0 %v393
    %v395 = vpop.f32.mrb[0].mxu0
    %v396 = vadd.f32 %v311, %v395
    %v397 = vpop.f32.mrb[0].mxu0
    %398 = vdwg.mxu0
    %399 = vmatprep.subr.mxu0 0.0
    %v400 = vand.u32 %v23, 4294901760
    %v401 = vsub.f32 %v23, %v400
    %v402 = vand.u32 %v401, 4294901760
    %403 = vmatpush1.msra.mxu0 %v402
    %404 = vmatprep.subr.mxu0 0.0
    %v405 = vand.u32 %v24, 4294901760
    %v406 = vsub.f32 %v24, %v405
    %v407 = vand.u32 %v406, 4294901760
    %408 = vmatpush1.msra.mxu0 %v407
    %409 = vmatprep.subr.mxu0 0.0
    %v410 = vand.u32 %v25, 4294901760
    %v411 = vsub.f32 %v25, %v410
    %v412 = vand.u32 %v411, 4294901760
    %413 = vmatpush1.msra.mxu0 %v412
    %414 = vmatprep.subr.mxu0 0.0
    %v415 = vand.u32 %v26, 4294901760
    %v416 = vsub.f32 %v26, %v415
    %v417 = vand.u32 %v416, 4294901760
    %418 = vmatpush1.msra.mxu0 %v417
    %419 = vmatprep.subr.mxu0 0.0
    %420 = vmatpush1.msra.mxu0 0.0
    %421 = vmatprep.subr.mxu0 0.0
    %422 = vmatpush1.msra.mxu0 0.0
    %423 = vmatprep.subr.mxu0 0.0
    %424 = vmatpush1.msra.mxu0 0.0
    %425 = vmatprep.subr.mxu0 0.0
    %426 = vmatpush1.msra.mxu0 0.0
    %427 = vmatprep.subr.mxu0 0.0
    %428 = vmatpush1.msra.mxu0 0.0
    %429 = vmatprep.subr.mxu0 0.0
    %430 = vmatpush1.msra.mxu0 0.0
    %431 = vmatprep.subr.mxu0 0.0
    %432 = vmatpush1.msra.mxu0 0.0
    %433 = vmatprep.subr.mxu0 0.0
    %434 = vmatpush1.msra.mxu0 0.0
    %435 = vmatprep.subr.mxu0 0.0
    %436 = vmatpush1.msra.mxu0 0.0
    %437 = vmatprep.subr.mxu0 0.0
    %438 = vmatpush1.msra.mxu0 0.0
    %439 = vmatprep.subr.mxu0 0.0
    %440 = vmatpush1.msra.mxu0 0.0
    %441 = vmatprep.subr.mxu0 0.0
    %442 = vmatpush1.msra.mxu0 0.0
    %443 = vmatprep.subr.mxu0 0.0
    %444 = vmatpush1.msra.mxu0 0.0
    %445 = vmatprep.subr.mxu0 0.0
    %446 = vmatpush1.msra.mxu0 0.0
    %447 = vmatprep.subr.mxu0 0.0
    %448 = vmatpush1.msra.mxu0 0.0
    %449 = vmatprep.subr.mxu0 0.0
    %450 = vmatpush1.msra.mxu0 0.0
    %451 = vmatprep.subr.mxu0 0.0
    %452 = vmatpush1.msra.mxu0 0.0
    %453 = vmatprep.subr.mxu0 0.0
    %454 = vmatpush1.msra.mxu0 0.0
    %455 = vmatprep.subr.mxu0 0.0
    %456 = vmatpush1.msra.mxu0 0.0
    %457 = vmatprep.subr.mxu0 0.0
    %458 = vmatpush1.msra.mxu0 0.0
    %459 = vmatprep.subr.mxu0 0.0
    %460 = vmatpush1.msra.mxu0 0.0
    %461 = vmatprep.subr.mxu0 0.0
    %462 = vmatpush1.msra.mxu0 0.0
    %463 = vmatprep.subr.mxu0 0.0
    %464 = vmatpush1.msra.mxu0 0.0
    %465 = vmatprep.subr.mxu0 0.0
    %466 = vmatpush1.msra.mxu0 0.0
    %467 = vmatprep.subr.mxu0 0.0
    %468 = vmatpush1.msra.mxu0 0.0
    %469 = vmatprep.subr.mxu0 0.0
    %470 = vmatpush1.msra.mxu0 0.0
    %471 = vmatprep.subr.mxu0 0.0
    %472 = vmatpush1.msra.mxu0 0.0
    %473 = vmatprep.subr.mxu0 0.0
    %474 = vmatpush1.msra.mxu0 0.0
    %475 = vmatprep.mubr.f32.mxu0 0.0
    %v476 = vand.u32 %v36, 4294901760
    %477 = vmatmul.mubr.f32.gmra.mrb[0].mxu0 %v476
    %v478 = vpop.f32.mrb[0].mxu0
    %v479 = vadd.f32 %v388, %v478
    %v480 = vpop.f32.mrb[0].mxu0
    %481 = vmatprep.mubr.f32.mxu0 0.0
    %v482 = vand.u32 %v39, 4294901760
    %483 = vmatmul.mubr.f32.gmra.mrb[0].mxu0 %v482
    %v484 = vpop.f32.mrb[0].mxu0
    %v485 = vadd.f32 %v396, %v484
    %v486 = vpop.f32.mrb[0].mxu0
    %487 = vdwg.mxu0
    %488 = vmatprep.subr.mxu0 0.0
    %v489 = vand.u32 %v23, 4294901760
    %490 = vmatpush1.msra.mxu0 %v489
    %491 = vmatprep.subr.mxu0 0.0
    %v492 = vand.u32 %v24, 4294901760
    %493 = vmatpush1.msra.mxu0 %v492
    %494 = vmatprep.subr.mxu0 0.0
    %v495 = vand.u32 %v25, 4294901760
    %496 = vmatpush1.msra.mxu0 %v495
    %497 = vmatprep.subr.mxu0 0.0
    %v498 = vand.u32 %v26, 4294901760
    %499 = vmatpush1.msra.mxu0 %v498
    %500 = vmatprep.subr.mxu0 0.0
    %501 = vmatpush1.msra.mxu0 0.0
    %502 = vmatprep.subr.mxu0 0.0
    %503 = vmatpush1.msra.mxu0 0.0
    %504 = vmatprep.subr.mxu0 0.0
    %505 = vmatpush1.msra.mxu0 0.0
    %506 = vmatprep.subr.mxu0 0.0
    %507 = vmatpush1.msra.mxu0 0.0
    %508 = vmatprep.subr.mxu0 0.0
    %509 = vmatpush1.msra.mxu0 0.0
    %510 = vmatprep.subr.mxu0 0.0
    %511 = vmatpush1.msra.mxu0 0.0
    %512 = vmatprep.subr.mxu0 0.0
    %513 = vmatpush1.msra.mxu0 0.0
    %514 = vmatprep.subr.mxu0 0.0
    %515 = vmatpush1.msra.mxu0 0.0
    %516 = vmatprep.subr.mxu0 0.0
    %517 = vmatpush1.msra.mxu0 0.0
    %518 = vmatprep.subr.mxu0 0.0
    %519 = vmatpush1.msra.mxu0 0.0
    %520 = vmatprep.subr.mxu0 0.0
    %521 = vmatpush1.msra.mxu0 0.0
    %522 = vmatprep.subr.mxu0 0.0
    %523 = vmatpush1.msra.mxu0 0.0
    %524 = vmatprep.subr.mxu0 0.0
    %525 = vmatpush1.msra.mxu0 0.0
    %526 = vmatprep.subr.mxu0 0.0
    %527 = vmatpush1.msra.mxu0 0.0
    %528 = vmatprep.subr.mxu0 0.0
    %529 = vmatpush1.msra.mxu0 0.0
    %530 = vmatprep.subr.mxu0 0.0
    %531 = vmatpush1.msra.mxu0 0.0
    %532 = vmatprep.subr.mxu0 0.0
    %533 = vmatpush1.msra.mxu0 0.0
    %534 = vmatprep.subr.mxu0 0.0
    %535 = vmatpush1.msra.mxu0 0.0
    %536 = vmatprep.subr.mxu0 0.0
    %537 = vmatpush1.msra.mxu0 0.0
    %538 = vmatprep.subr.mxu0 0.0
    %539 = vmatpush1.msra.mxu0 0.0
    %540 = vmatprep.subr.mxu0 0.0
    %541 = vmatpush1.msra.mxu0 0.0
    %542 = vmatprep.subr.mxu0 0.0
    %543 = vmatpush1.msra.mxu0 0.0
    %544 = vmatprep.subr.mxu0 0.0
    %545 = vmatpush1.msra.mxu0 0.0
    %546 = vmatprep.subr.mxu0 0.0
    %547 = vmatpush1.msra.mxu0 0.0
    %548 = vmatprep.subr.mxu0 0.0
    %549 = vmatpush1.msra.mxu0 0.0
    %550 = vmatprep.subr.mxu0 0.0
    %551 = vmatpush1.msra.mxu0 0.0
    %552 = vmatprep.subr.mxu0 0.0
    %553 = vmatpush1.msra.mxu0 0.0
    %554 = vmatprep.subr.mxu0 0.0
    %555 = vmatpush1.msra.mxu0 0.0
    %556 = vmatprep.mubr.f32.mxu0 0.0
    %v557 = vand.u32 %v36, 4294901760
    %558 = vmatmul.mubr.f32.gmra.mrb[0].mxu0 %v557
    %v559 = vpop.f32.mrb[0].mxu0
    %v560 = vadd.f32 %v479, %v559
    %v561 = vpop.f32.mrb[0].mxu0
    %562 = vmatprep.mubr.f32.mxu0 0.0
    %v563 = vand.u32 %v39, 4294901760
    %564 = vmatmul.mubr.f32.gmra.mrb[0].mxu0 %v563
    %v565 = vpop.f32.mrb[0].mxu0
    %v566 = vadd.f32 %v485, %v565
    %v567 = vpop.f32.mrb[0].mxu0
    %568 = vdwg.mxu0
    %v569 = vmul.f32 %v560, 0.5
    %v570 = vmul.f32 %v566, 0.5
    %v571 = vmul.f32 %v560, 0.70710677
    %v572 = vmul.f32 %v566, 0.70710677
    %v573 = verf.f32.pop %v571
    %v574 = verf.f32.pop %v572
    %v575 = vadd.f32 %v573, 1.0
    %v576 = vadd.f32 %v574, 1.0
    %v577 = vmul.f32 %v569, %v575
    %v578 = vmul.f32 %v570, %v576
    %v579 = vld [vmem:[%s3] sm:$0xff]
    %v580 = vld [vmem:[%s3 + $0x8] sm:$0xff]
    %v581 = vld [vmem:[%s3 + $0x10] sm:$0xff]
    %v582 = vld [vmem:[%s3 + $0x18] sm:$0xff]
    %v583 = vld [vmem:[%s3 + $0x20] sm:$0xff]
    %v584 = vld [vmem:[%s3 + $0x28] sm:$0xff]
    %v585 = vld [vmem:[%s3 + $0x30] sm:$0xff]
    %v586 = vld [vmem:[%s3 + $0x38] sm:$0xff]
    %v587 = vld [vmem:[%s4] sm:$0x1]
    %v589 = vlaneseq
    %v590 = vshrl.u32 %v589, 7
    %v591 = vsub.s32 0, %v590
    %v592 = vrot.slane %v587, %v591
    %vm594 = vcmask 523264
    %v596 = vsel %vm594, %v577, 0
    %v599 = vsel %vm594, %v578, 0
    %601 = vmatprep.subr.mxu0 0.0
    %v602 = vand.u32 %v579, 4294901760
    %603 = vmatpush1.msra.mxu0 %v602
    %604 = vmatprep.subr.mxu0 0.0
    %v605 = vand.u32 %v580, 4294901760
    %606 = vmatpush1.msra.mxu0 %v605
    %607 = vmatprep.subr.mxu0 0.0
    %v608 = vand.u32 %v581, 4294901760
    %609 = vmatpush1.msra.mxu0 %v608
    %610 = vmatprep.subr.mxu0 0.0
    %v611 = vand.u32 %v582, 4294901760
    %612 = vmatpush1.msra.mxu0 %v611
    %613 = vmatprep.subr.mxu0 0.0
    %v614 = vand.u32 %v583, 4294901760
    %615 = vmatpush1.msra.mxu0 %v614
    %616 = vmatprep.subr.mxu0 0.0
    %v617 = vand.u32 %v584, 4294901760
    %618 = vmatpush1.msra.mxu0 %v617
    %619 = vmatprep.subr.mxu0 0.0
    %v620 = vand.u32 %v585, 4294901760
    %621 = vmatpush1.msra.mxu0 %v620
    %622 = vmatprep.subr.mxu0 0.0
    %v623 = vand.u32 %v586, 4294901760
    %624 = vmatpush1.msra.mxu0 %v623
    %625 = vmatprep.subr.mxu0 0.0
    %626 = vmatpush1.msra.mxu0 0.0
    %627 = vmatprep.subr.mxu0 0.0
    %628 = vmatpush1.msra.mxu0 0.0
    %629 = vmatprep.subr.mxu0 0.0
    %630 = vmatpush1.msra.mxu0 0.0
    %631 = vmatprep.subr.mxu0 0.0
    %632 = vmatpush1.msra.mxu0 0.0
    %633 = vmatprep.subr.mxu0 0.0
    %634 = vmatpush1.msra.mxu0 0.0
    %635 = vmatprep.subr.mxu0 0.0
    %636 = vmatpush1.msra.mxu0 0.0
    %637 = vmatprep.subr.mxu0 0.0
    %638 = vmatpush1.msra.mxu0 0.0
    %639 = vmatprep.subr.mxu0 0.0
    %640 = vmatpush1.msra.mxu0 0.0
    %641 = vmatprep.subr.mxu0 0.0
    %642 = vmatpush1.msra.mxu0 0.0
    %643 = vmatprep.subr.mxu0 0.0
    %644 = vmatpush1.msra.mxu0 0.0
    %645 = vmatprep.subr.mxu0 0.0
    %646 = vmatpush1.msra.mxu0 0.0
    %647 = vmatprep.subr.mxu0 0.0
    %648 = vmatpush1.msra.mxu0 0.0
    %649 = vmatprep.subr.mxu0 0.0
    %650 = vmatpush1.msra.mxu0 0.0
    %651 = vmatprep.subr.mxu0 0.0
    %652 = vmatpush1.msra.mxu0 0.0
    %653 = vmatprep.subr.mxu0 0.0
    %654 = vmatpush1.msra.mxu0 0.0
    %655 = vmatprep.subr.mxu0 0.0
    %656 = vmatpush1.msra.mxu0 0.0
    %657 = vmatprep.subr.mxu0 0.0
    %658 = vmatpush1.msra.mxu0 0.0
    %659 = vmatprep.subr.mxu0 0.0
    %660 = vmatpush1.msra.mxu0 0.0
    %661 = vmatprep.subr.mxu0 0.0
    %662 = vmatpush1.msra.mxu0 0.0
    %663 = vmatprep.subr.mxu0 0.0
    %664 = vmatpush1.msra.mxu0 0.0
    %665 = vmatprep.subr.mxu0 0.0
    %666 = vmatpush1.msra.mxu0 0.0
    %667 = vmatprep.subr.mxu0 0.0
    %668 = vmatpush1.msra.mxu0 0.0
    %669 = vmatprep.subr.mxu0 0.0
    %670 = vmatpush1.msra.mxu0 0.0
    %671 = vmatprep.subr.mxu0 0.0
    %672 = vmatpush1.msra.mxu0 0.0
    %673 = vmatprep.mubr.f32.mxu0 0.0
    %v674 = vand.u32 %v596, 4294901760
    %v675 = vsub.f32 %v596, %v674
    %v676 = vand.u32 %v675, 4294901760
    %v677 = vsub.f32 %v675, %v676
    %v678 = vand.u32 %v677, 4294901760
    %679 = vmatmul.mubr.f32.gmra.mrb[0].mxu0 %v678
    %v680 = vpop.f32.mrb[0].mxu0
    %v681 = vadd.f32 %v592, %v680
    %v682 = vpop.f32.mrb[0].mxu0
    %683 = vmatprep.mubr.f32.mxu0 0.0
    %v684 = vand.u32 %v599, 4294901760
    %v685 = vsub.f32 %v599, %v684
    %v686 = vand.u32 %v685, 4294901760
    %v687 = vsub.f32 %v685, %v686
    %v688 = vand.u32 %v687, 4294901760
    %689 = vmatmul.mubr.f32.gmra.mrb[0].mxu0 %v688
    %v690 = vpop.f32.mrb[0].mxu0
    %v691 = vadd.f32 %v592, %v690
    %v692 = vpop.f32.mrb[0].mxu0
    %693 = vdwg.mxu0
    %694 = vmatprep.subr.mxu0 0.0
    %v695 = vand.u32 %v579, 4294901760
    %v696 = vsub.f32 %v579, %v695
    %v697 = vand.u32 %v696, 4294901760
    %v698 = vsub.f32 %v696, %v697
    %v699 = vand.u32 %v698, 4294901760
    %700 = vmatpush1.msra.mxu0 %v699
    %701 = vmatprep.subr.mxu0 0.0
    %v702 = vand.u32 %v580, 4294901760
    %v703 = vsub.f32 %v580, %v702
    %v704 = vand.u32 %v703, 4294901760
    %v705 = vsub.f32 %v703, %v704
    %v706 = vand.u32 %v705, 4294901760
    %707 = vmatpush1.msra.mxu0 %v706
    %708 = vmatprep.subr.mxu0 0.0
    %v709 = vand.u32 %v581, 4294901760
    %v710 = vsub.f32 %v581, %v709
    %v711 = vand.u32 %v710, 4294901760
    %v712 = vsub.f32 %v710, %v711
    %v713 = vand.u32 %v712, 4294901760
    %714 = vmatpush1.msra.mxu0 %v713
    %715 = vmatprep.subr.mxu0 0.0
    %v716 = vand.u32 %v582, 4294901760
    %v717 = vsub.f32 %v582, %v716
    %v718 = vand.u32 %v717, 4294901760
    %v719 = vsub.f32 %v717, %v718
    %v720 = vand.u32 %v719, 4294901760
    %721 = vmatpush1.msra.mxu0 %v720
    %722 = vmatprep.subr.mxu0 0.0
    %v723 = vand.u32 %v583, 4294901760
    %v724 = vsub.f32 %v583, %v723
    %v725 = vand.u32 %v724, 4294901760
    %v726 = vsub.f32 %v724, %v725
    %v727 = vand.u32 %v726, 4294901760
    %728 = vmatpush1.msra.mxu0 %v727
    %729 = vmatprep.subr.mxu0 0.0
    %v730 = vand.u32 %v584, 4294901760
    %v731 = vsub.f32 %v584, %v730
    %v732 = vand.u32 %v731, 4294901760
    %v733 = vsub.f32 %v731, %v732
    %v734 = vand.u32 %v733, 4294901760
    %735 = vmatpush1.msra.mxu0 %v734
    %736 = vmatprep.subr.mxu0 0.0
    %v737 = vand.u32 %v585, 4294901760
    %v738 = vsub.f32 %v585, %v737
    %v739 = vand.u32 %v738, 4294901760
    %v740 = vsub.f32 %v738, %v739
    %v741 = vand.u32 %v740, 4294901760
    %742 = vmatpush1.msra.mxu0 %v741
    %743 = vmatprep.subr.mxu0 0.0
    %v744 = vand.u32 %v586, 4294901760
    %v745 = vsub.f32 %v586, %v744
    %v746 = vand.u32 %v745, 4294901760
    %v747 = vsub.f32 %v745, %v746
    %v748 = vand.u32 %v747, 4294901760
    %749 = vmatpush1.msra.mxu0 %v748
    %750 = vmatprep.subr.mxu0 0.0
    %751 = vmatpush1.msra.mxu0 0.0
    %752 = vmatprep.subr.mxu0 0.0
    %753 = vmatpush1.msra.mxu0 0.0
    %754 = vmatprep.subr.mxu0 0.0
    %755 = vmatpush1.msra.mxu0 0.0
    %756 = vmatprep.subr.mxu0 0.0
    %757 = vmatpush1.msra.mxu0 0.0
    %758 = vmatprep.subr.mxu0 0.0
    %759 = vmatpush1.msra.mxu0 0.0
    %760 = vmatprep.subr.mxu0 0.0
    %761 = vmatpush1.msra.mxu0 0.0
    %762 = vmatprep.subr.mxu0 0.0
    %763 = vmatpush1.msra.mxu0 0.0
    %764 = vmatprep.subr.mxu0 0.0
    %765 = vmatpush1.msra.mxu0 0.0
    %766 = vmatprep.subr.mxu0 0.0
    %767 = vmatpush1.msra.mxu0 0.0
    %768 = vmatprep.subr.mxu0 0.0
    %769 = vmatpush1.msra.mxu0 0.0
    %770 = vmatprep.subr.mxu0 0.0
    %771 = vmatpush1.msra.mxu0 0.0
    %772 = vmatprep.subr.mxu0 0.0
    %773 = vmatpush1.msra.mxu0 0.0
    %774 = vmatprep.subr.mxu0 0.0
    %775 = vmatpush1.msra.mxu0 0.0
    %776 = vmatprep.subr.mxu0 0.0
    %777 = vmatpush1.msra.mxu0 0.0
    %778 = vmatprep.subr.mxu0 0.0
    %779 = vmatpush1.msra.mxu0 0.0
    %780 = vmatprep.subr.mxu0 0.0
    %781 = vmatpush1.msra.mxu0 0.0
    %782 = vmatprep.subr.mxu0 0.0
    %783 = vmatpush1.msra.mxu0 0.0
    %784 = vmatprep.subr.mxu0 0.0
    %785 = vmatpush1.msra.mxu0 0.0
    %786 = vmatprep.subr.mxu0 0.0
    %787 = vmatpush1.msra.mxu0 0.0
    %788 = vmatprep.subr.mxu0 0.0
    %789 = vmatpush1.msra.mxu0 0.0
    %790 = vmatprep.subr.mxu0 0.0
    %791 = vmatpush1.msra.mxu0 0.0
    %792 = vmatprep.subr.mxu0 0.0
    %793 = vmatpush1.msra.mxu0 0.0
    %794 = vmatprep.subr.mxu0 0.0
    %795 = vmatpush1.msra.mxu0 0.0
    %796 = vmatprep.subr.mxu0 0.0
    %797 = vmatpush1.msra.mxu0 0.0
    %798 = vmatprep.mubr.f32.mxu0 0.0
    %v799 = vand.u32 %v596, 4294901760
    %800 = vmatmul.mubr.f32.gmra.mrb[0].mxu0 %v799
    %v801 = vpop.f32.mrb[0].mxu0
    %v802 = vadd.f32 %v681, %v801
    %v803 = vpop.f32.mrb[0].mxu0
    %804 = vmatprep.mubr.f32.mxu0 0.0
    %v805 = vand.u32 %v599, 4294901760
    %806 = vmatmul.mubr.f32.gmra.mrb[0].mxu0 %v805
    %v807 = vpop.f32.mrb[0].mxu0
    %v808 = vadd.f32 %v691, %v807
    %v809 = vpop.f32.mrb[0].mxu0
    %810 = vdwg.mxu0
    %811 = vmatprep.subr.mxu0 0.0
    %v812 = vand.u32 %v579, 4294901760
    %v813 = vsub.f32 %v579, %v812
    %814 = vmatpush1.msra.mxu0 %v813
    %815 = vmatprep.subr.mxu0 0.0
    %v816 = vand.u32 %v580, 4294901760
    %v817 = vsub.f32 %v580, %v816
    %818 = vmatpush1.msra.mxu0 %v817
    %819 = vmatprep.subr.mxu0 0.0
    %v820 = vand.u32 %v581, 4294901760
    %v821 = vsub.f32 %v581, %v820
    %822 = vmatpush1.msra.mxu0 %v821
    %823 = vmatprep.subr.mxu0 0.0
    %v824 = vand.u32 %v582, 4294901760
    %v825 = vsub.f32 %v582, %v824
    %826 = vmatpush1.msra.mxu0 %v825
    %827 = vmatprep.subr.mxu0 0.0
    %v828 = vand.u32 %v583, 4294901760
    %v829 = vsub.f32 %v583, %v828
    %830 = vmatpush1.msra.mxu0 %v829
    %831 = vmatprep.subr.mxu0 0.0
    %v832 = vand.u32 %v584, 4294901760
    %v833 = vsub.f32 %v584, %v832
    %834 = vmatpush1.msra.mxu0 %v833
    %835 = vmatprep.subr.mxu0 0.0
    %v836 = vand.u32 %v585, 4294901760
    %v837 = vsub.f32 %v585, %v836
    %838 = vmatpush1.msra.mxu0 %v837
    %839 = vmatprep.subr.mxu0 0.0
    %v840 = vand.u32 %v586, 4294901760
    %v841 = vsub.f32 %v586, %v840
    %842 = vmatpush1.msra.mxu0 %v841
    %843 = vmatprep.subr.mxu0 0.0
    %844 = vmatpush1.msra.mxu0 0.0
    %845 = vmatprep.subr.mxu0 0.0
    %846 = vmatpush1.msra.mxu0 0.0
    %847 = vmatprep.subr.mxu0 0.0
    %848 = vmatpush1.msra.mxu0 0.0
    %849 = vmatprep.subr.mxu0 0.0
    %850 = vmatpush1.msra.mxu0 0.0
    %851 = vmatprep.subr.mxu0 0.0
    %852 = vmatpush1.msra.mxu0 0.0
    %853 = vmatprep.subr.mxu0 0.0
    %854 = vmatpush1.msra.mxu0 0.0
    %855 = vmatprep.subr.mxu0 0.0
    %856 = vmatpush1.msra.mxu0 0.0
    %857 = vmatprep.subr.mxu0 0.0
    %858 = vmatpush1.msra.mxu0 0.0
    %859 = vmatprep.subr.mxu0 0.0
    %860 = vmatpush1.msra.mxu0 0.0
    %861 = vmatprep.subr.mxu0 0.0
    %862 = vmatpush1.msra.mxu0 0.0
    %863 = vmatprep.subr.mxu0 0.0
    %864 = vmatpush1.msra.mxu0 0.0
    %865 = vmatprep.subr.mxu0 0.0
    %866 = vmatpush1.msra.mxu0 0.0
    %867 = vmatprep.subr.mxu0 0.0
    %868 = vmatpush1.msra.mxu0 0.0
    %869 = vmatprep.subr.mxu0 0.0
    %870 = vmatpush1.msra.mxu0 0.0
    %871 = vmatprep.subr.mxu0 0.0
    %872 = vmatpush1.msra.mxu0 0.0
    %873 = vmatprep.subr.mxu0 0.0
    %874 = vmatpush1.msra.mxu0 0.0
    %875 = vmatprep.subr.mxu0 0.0
    %876 = vmatpush1.msra.mxu0 0.0
    %877 = vmatprep.subr.mxu0 0.0
    %878 = vmatpush1.msra.mxu0 0.0
    %879 = vmatprep.subr.mxu0 0.0
    %880 = vmatpush1.msra.mxu0 0.0
    %881 = vmatprep.subr.mxu0 0.0
    %882 = vmatpush1.msra.mxu0 0.0
    %883 = vmatprep.subr.mxu0 0.0
    %884 = vmatpush1.msra.mxu0 0.0
    %885 = vmatprep.subr.mxu0 0.0
    %886 = vmatpush1.msra.mxu0 0.0
    %887 = vmatprep.subr.mxu0 0.0
    %888 = vmatpush1.msra.mxu0 0.0
    %889 = vmatprep.subr.mxu0 0.0
    %890 = vmatpush1.msra.mxu0 0.0
    %891 = vmatprep.mubr.f32.mxu0 0.0
    %v892 = vand.u32 %v596, 4294901760
    %v893 = vsub.f32 %v596, %v892
    %894 = vmatmul.mubr.f32.gmra.mrb[0].mxu0 %v893
    %v895 = vpop.f32.mrb[0].mxu0
    %v896 = vadd.f32 %v802, %v895
    %v897 = vpop.f32.mrb[0].mxu0
    %898 = vmatprep.mubr.f32.mxu0 0.0
    %v899 = vand.u32 %v599, 4294901760
    %v900 = vsub.f32 %v599, %v899
    %901 = vmatmul.mubr.f32.gmra.mrb[0].mxu0 %v900
    %v902 = vpop.f32.mrb[0].mxu0
    %v903 = vadd.f32 %v808, %v902
    %v904 = vpop.f32.mrb[0].mxu0
    %905 = vdwg.mxu0
    %906 = vmatprep.subr.mxu0 0.0
    %v907 = vand.u32 %v579, 4294901760
    %908 = vmatpush1.msra.mxu0 %v907
    %909 = vmatprep.subr.mxu0 0.0
    %v910 = vand.u32 %v580, 4294901760
    %911 = vmatpush1.msra.mxu0 %v910
    %912 = vmatprep.subr.mxu0 0.0
    %v913 = vand.u32 %v581, 4294901760
    %914 = vmatpush1.msra.mxu0 %v913
    %915 = vmatprep.subr.mxu0 0.0
    %v916 = vand.u32 %v582, 4294901760
    %917 = vmatpush1.msra.mxu0 %v916
    %918 = vmatprep.subr.mxu0 0.0
    %v919 = vand.u32 %v583, 4294901760
    %920 = vmatpush1.msra.mxu0 %v919
    %921 = vmatprep.subr.mxu0 0.0
    %v922 = vand.u32 %v584, 4294901760
    %923 = vmatpush1.msra.mxu0 %v922
    %924 = vmatprep.subr.mxu0 0.0
    %v925 = vand.u32 %v585, 4294901760
    %926 = vmatpush1.msra.mxu0 %v925
    %927 = vmatprep.subr.mxu0 0.0
    %v928 = vand.u32 %v586, 4294901760
    %929 = vmatpush1.msra.mxu0 %v928
    %930 = vmatprep.subr.mxu0 0.0
    %931 = vmatpush1.msra.mxu0 0.0
    %932 = vmatprep.subr.mxu0 0.0
    %933 = vmatpush1.msra.mxu0 0.0
    %934 = vmatprep.subr.mxu0 0.0
    %935 = vmatpush1.msra.mxu0 0.0
    %936 = vmatprep.subr.mxu0 0.0
    %937 = vmatpush1.msra.mxu0 0.0
    %938 = vmatprep.subr.mxu0 0.0
    %939 = vmatpush1.msra.mxu0 0.0
    %940 = vmatprep.subr.mxu0 0.0
    %941 = vmatpush1.msra.mxu0 0.0
    %942 = vmatprep.subr.mxu0 0.0
    %943 = vmatpush1.msra.mxu0 0.0
    %944 = vmatprep.subr.mxu0 0.0
    %945 = vmatpush1.msra.mxu0 0.0
    %946 = vmatprep.subr.mxu0 0.0
    %947 = vmatpush1.msra.mxu0 0.0
    %948 = vmatprep.subr.mxu0 0.0
    %949 = vmatpush1.msra.mxu0 0.0
    %950 = vmatprep.subr.mxu0 0.0
    %951 = vmatpush1.msra.mxu0 0.0
    %952 = vmatprep.subr.mxu0 0.0
    %953 = vmatpush1.msra.mxu0 0.0
    %954 = vmatprep.subr.mxu0 0.0
    %955 = vmatpush1.msra.mxu0 0.0
    %956 = vmatprep.subr.mxu0 0.0
    %957 = vmatpush1.msra.mxu0 0.0
    %958 = vmatprep.subr.mxu0 0.0
    %959 = vmatpush1.msra.mxu0 0.0
    %960 = vmatprep.subr.mxu0 0.0
    %961 = vmatpush1.msra.mxu0 0.0
    %962 = vmatprep.subr.mxu0 0.0
    %963 = vmatpush1.msra.mxu0 0.0
    %964 = vmatprep.subr.mxu0 0.0
    %965 = vmatpush1.msra.mxu0 0.0
    %966 = vmatprep.subr.mxu0 0.0
    %967 = vmatpush1.msra.mxu0 0.0
    %968 = vmatprep.subr.mxu0 0.0
    %969 = vmatpush1.msra.mxu0 0.0
    %970 = vmatprep.subr.mxu0 0.0
    %971 = vmatpush1.msra.mxu0 0.0
    %972 = vmatprep.subr.mxu0 0.0
    %973 = vmatpush1.msra.mxu0 0.0
    %974 = vmatprep.subr.mxu0 0.0
    %975 = vmatpush1.msra.mxu0 0.0
    %976 = vmatprep.subr.mxu0 0.0
    %977 = vmatpush1.msra.mxu0 0.0
    %978 = vmatprep.mubr.f32.mxu0 0.0
    %v979 = vand.u32 %v596, 4294901760
    %v980 = vsub.f32 %v596, %v979
    %v981 = vand.u32 %v980, 4294901760
    %982 = vmatmul.mubr.f32.gmra.mrb[0].mxu0 %v981
    %v983 = vpop.f32.mrb[0].mxu0
    %v984 = vadd.f32 %v896, %v983
    %v985 = vpop.f32.mrb[0].mxu0
    %986 = vmatprep.mubr.f32.mxu0 0.0
    %v987 = vand.u32 %v599, 4294901760
    %v988 = vsub.f32 %v599, %v987
    %v989 = vand.u32 %v988, 4294901760
    %990 = vmatmul.mubr.f32.gmra.mrb[0].mxu0 %v989
    %v991 = vpop.f32.mrb[0].mxu0
    %v992 = vadd.f32 %v903, %v991
    %v993 = vpop.f32.mrb[0].mxu0
    %994 = vdwg.mxu0
    %995 = vmatprep.subr.mxu0 0.0
    %v996 = vand.u32 %v579, 4294901760
    %v997 = vsub.f32 %v579, %v996
    %v998 = vand.u32 %v997, 4294901760
    %999 = vmatpush1.msra.mxu0 %v998
    %1000 = vmatprep.subr.mxu0 0.0
    %v1001 = vand.u32 %v580, 4294901760
    %v1002 = vsub.f32 %v580, %v1001
    %v1003 = vand.u32 %v1002, 4294901760
    %1004 = vmatpush1.msra.mxu0 %v1003
    %1005 = vmatprep.subr.mxu0 0.0
    %v1006 = vand.u32 %v581, 4294901760
    %v1007 = vsub.f32 %v581, %v1006
    %v1008 = vand.u32 %v1007, 4294901760
    %1009 = vmatpush1.msra.mxu0 %v1008
    %1010 = vmatprep.subr.mxu0 0.0
    %v1011 = vand.u32 %v582, 4294901760
    %v1012 = vsub.f32 %v582, %v1011
    %v1013 = vand.u32 %v1012, 4294901760
    %1014 = vmatpush1.msra.mxu0 %v1013
    %1015 = vmatprep.subr.mxu0 0.0
    %v1016 = vand.u32 %v583, 4294901760
    %v1017 = vsub.f32 %v583, %v1016
    %v1018 = vand.u32 %v1017, 4294901760
    %1019 = vmatpush1.msra.mxu0 %v1018
    %1020 = vmatprep.subr.mxu0 0.0
    %v1021 = vand.u32 %v584, 4294901760
    %v1022 = vsub.f32 %v584, %v1021
    %v1023 = vand.u32 %v1022, 4294901760
    %1024 = vmatpush1.msra.mxu0 %v1023
    %1025 = vmatprep.subr.mxu0 0.0
    %v1026 = vand.u32 %v585, 4294901760
    %v1027 = vsub.f32 %v585, %v1026
    %v1028 = vand.u32 %v1027, 4294901760
    %1029 = vmatpush1.msra.mxu0 %v1028
    %1030 = vmatprep.subr.mxu0 0.0
    %v1031 = vand.u32 %v586, 4294901760
    %v1032 = vsub.f32 %v586, %v1031
    %v1033 = vand.u32 %v1032, 4294901760
    %1034 = vmatpush1.msra.mxu0 %v1033
    %1035 = vmatprep.subr.mxu0 0.0
    %1036 = vmatpush1.msra.mxu0 0.0
    %1037 = vmatprep.subr.mxu0 0.0
    %1038 = vmatpush1.msra.mxu0 0.0
    %1039 = vmatprep.subr.mxu0 0.0
    %1040 = vmatpush1.msra.mxu0 0.0
    %1041 = vmatprep.subr.mxu0 0.0
    %1042 = vmatpush1.msra.mxu0 0.0
    %1043 = vmatprep.subr.mxu0 0.0
    %1044 = vmatpush1.msra.mxu0 0.0
    %1045 = vmatprep.subr.mxu0 0.0
    %1046 = vmatpush1.msra.mxu0 0.0
    %1047 = vmatprep.subr.mxu0 0.0
    %1048 = vmatpush1.msra.mxu0 0.0
    %1049 = vmatprep.subr.mxu0 0.0
    %1050 = vmatpush1.msra.mxu0 0.0
    %1051 = vmatprep.subr.mxu0 0.0
    %1052 = vmatpush1.msra.mxu0 0.0
    %1053 = vmatprep.subr.mxu0 0.0
    %1054 = vmatpush1.msra.mxu0 0.0
    %1055 = vmatprep.subr.mxu0 0.0
    %1056 = vmatpush1.msra.mxu0 0.0
    %1057 = vmatprep.subr.mxu0 0.0
    %1058 = vmatpush1.msra.mxu0 0.0
    %1059 = vmatprep.subr.mxu0 0.0
    %1060 = vmatpush1.msra.mxu0 0.0
    %1061 = vmatprep.subr.mxu0 0.0
    %1062 = vmatpush1.msra.mxu0 0.0
    %1063 = vmatprep.subr.mxu0 0.0
    %1064 = vmatpush1.msra.mxu0 0.0
    %1065 = vmatprep.subr.mxu0 0.0
    %1066 = vmatpush1.msra.mxu0 0.0
    %1067 = vmatprep.subr.mxu0 0.0
    %1068 = vmatpush1.msra.mxu0 0.0
    %1069 = vmatprep.subr.mxu0 0.0
    %1070 = vmatpush1.msra.mxu0 0.0
    %1071 = vmatprep.subr.mxu0 0.0
    %1072 = vmatpush1.msra.mxu0 0.0
    %1073 = vmatprep.subr.mxu0 0.0
    %1074 = vmatpush1.msra.mxu0 0.0
    %1075 = vmatprep.subr.mxu0 0.0
    %1076 = vmatpush1.msra.mxu0 0.0
    %1077 = vmatprep.subr.mxu0 0.0
    %1078 = vmatpush1.msra.mxu0 0.0
    %1079 = vmatprep.subr.mxu0 0.0
    %1080 = vmatpush1.msra.mxu0 0.0
    %1081 = vmatprep.subr.mxu0 0.0
    %1082 = vmatpush1.msra.mxu0 0.0
    %1083 = vmatprep.mubr.f32.mxu0 0.0
    %v1084 = vand.u32 %v596, 4294901760
    %1085 = vmatmul.mubr.f32.gmra.mrb[0].mxu0 %v1084
    %v1086 = vpop.f32.mrb[0].mxu0
    %v1087 = vadd.f32 %v984, %v1086
    %v1088 = vpop.f32.mrb[0].mxu0
    %1089 = vmatprep.mubr.f32.mxu0 0.0
    %v1090 = vand.u32 %v599, 4294901760
    %1091 = vmatmul.mubr.f32.gmra.mrb[0].mxu0 %v1090
    %v1092 = vpop.f32.mrb[0].mxu0
    %v1093 = vadd.f32 %v992, %v1092
    %v1094 = vpop.f32.mrb[0].mxu0
    %1095 = vdwg.mxu0
    %1096 = vmatprep.subr.mxu0 0.0
    %v1097 = vand.u32 %v579, 4294901760
    %1098 = vmatpush1.msra.mxu0 %v1097
    %1099 = vmatprep.subr.mxu0 0.0
    %v1100 = vand.u32 %v580, 4294901760
    %1101 = vmatpush1.msra.mxu0 %v1100
    %1102 = vmatprep.subr.mxu0 0.0
    %v1103 = vand.u32 %v581, 4294901760
    %1104 = vmatpush1.msra.mxu0 %v1103
    %1105 = vmatprep.subr.mxu0 0.0
    %v1106 = vand.u32 %v582, 4294901760
    %1107 = vmatpush1.msra.mxu0 %v1106
    %1108 = vmatprep.subr.mxu0 0.0
    %v1109 = vand.u32 %v583, 4294901760
    %1110 = vmatpush1.msra.mxu0 %v1109
    %1111 = vmatprep.subr.mxu0 0.0
    %v1112 = vand.u32 %v584, 4294901760
    %1113 = vmatpush1.msra.mxu0 %v1112
    %1114 = vmatprep.subr.mxu0 0.0
    %v1115 = vand.u32 %v585, 4294901760
    %1116 = vmatpush1.msra.mxu0 %v1115
    %1117 = vmatprep.subr.mxu0 0.0
    %v1118 = vand.u32 %v586, 4294901760
    %1119 = vmatpush1.msra.mxu0 %v1118
    %1120 = vmatprep.subr.mxu0 0.0
    %1121 = vmatpush1.msra.mxu0 0.0
    %1122 = vmatprep.subr.mxu0 0.0
    %1123 = vmatpush1.msra.mxu0 0.0
    %1124 = vmatprep.subr.mxu0 0.0
    %1125 = vmatpush1.msra.mxu0 0.0
    %1126 = vmatprep.subr.mxu0 0.0
    %1127 = vmatpush1.msra.mxu0 0.0
    %1128 = vmatprep.subr.mxu0 0.0
    %1129 = vmatpush1.msra.mxu0 0.0
    %1130 = vmatprep.subr.mxu0 0.0
    %1131 = vmatpush1.msra.mxu0 0.0
    %1132 = vmatprep.subr.mxu0 0.0
    %1133 = vmatpush1.msra.mxu0 0.0
    %1134 = vmatprep.subr.mxu0 0.0
    %1135 = vmatpush1.msra.mxu0 0.0
    %1136 = vmatprep.subr.mxu0 0.0
    %1137 = vmatpush1.msra.mxu0 0.0
    %1138 = vmatprep.subr.mxu0 0.0
    %1139 = vmatpush1.msra.mxu0 0.0
    %1140 = vmatprep.subr.mxu0 0.0
    %1141 = vmatpush1.msra.mxu0 0.0
    %1142 = vmatprep.subr.mxu0 0.0
    %1143 = vmatpush1.msra.mxu0 0.0
    %1144 = vmatprep.subr.mxu0 0.0
    %1145 = vmatpush1.msra.mxu0 0.0
    %1146 = vmatprep.subr.mxu0 0.0
    %1147 = vmatpush1.msra.mxu0 0.0
    %1148 = vmatprep.subr.mxu0 0.0
    %1149 = vmatpush1.msra.mxu0 0.0
    %1150 = vmatprep.subr.mxu0 0.0
    %1151 = vmatpush1.msra.mxu0 0.0
    %1152 = vmatprep.subr.mxu0 0.0
    %1153 = vmatpush1.msra.mxu0 0.0
    %1154 = vmatprep.subr.mxu0 0.0
    %1155 = vmatpush1.msra.mxu0 0.0
    %1156 = vmatprep.subr.mxu0 0.0
    %1157 = vmatpush1.msra.mxu0 0.0
    %1158 = vmatprep.subr.mxu0 0.0
    %1159 = vmatpush1.msra.mxu0 0.0
    %1160 = vmatprep.subr.mxu0 0.0
    %1161 = vmatpush1.msra.mxu0 0.0
    %1162 = vmatprep.subr.mxu0 0.0
    %1163 = vmatpush1.msra.mxu0 0.0
    %1164 = vmatprep.subr.mxu0 0.0
    %1165 = vmatpush1.msra.mxu0 0.0
    %1166 = vmatprep.subr.mxu0 0.0
    %1167 = vmatpush1.msra.mxu0 0.0
    %1168 = vmatprep.mubr.f32.mxu0 0.0
    %v1169 = vand.u32 %v596, 4294901760
    %1170 = vmatmul.mubr.f32.gmra.mrb[0].mxu0 %v1169
    %v1171 = vpop.f32.mrb[0].mxu0
    %v1172 = vadd.f32 %v1087, %v1171
    %v1173 = vpop.f32.mrb[0].mxu0
    %1174 = vmatprep.mubr.f32.mxu0 0.0
    %v1175 = vand.u32 %v599, 4294901760
    %1176 = vmatmul.mubr.f32.gmra.mrb[0].mxu0 %v1175
    %v1177 = vpop.f32.mrb[0].mxu0
    %v1178 = vadd.f32 %v1093, %v1177
    %v1179 = vpop.f32.mrb[0].mxu0
    %1180 = vdwg.mxu0
    %1181 = vst.msk [vmem:[#allocation2] sm:$0xff] %vm34, %v1172
    %1182 = vst.msk [vmem:[#allocation2 + $0x8] sm:$0xff] %vm34, %v1178
    // Predicated region
    $region22: #{tpu_custom_call.1} parent=1 // pred_check
      _
    $region23: #{tpu_custom_call.1} parent=1 // pred_check_branch
      %1184 = sbr.rel (0) target = $region25
    $region24: #{tpu_custom_call.1} parent=1 // pred_region
      %s1186 = ssub.s32 256, 256
      %1187 = vsyncadd [#allocation3], %s1186
      %s1188 = sshll.u32 [#allocation2], 4
      %s1189 = int_to_ptr.vmem [resolvable:$true] %s1188
      %1194 = dma.vmem_to_hbm [thread:$0]  %s1189, 256, %s5, [#allocation3], 128, 128, 8
    $region25: #{tpu_custom_call.1} parent=1 // pred_fallthru
      _
    // Predicated region
    $region26: #{tpu_custom_call.1} parent=1 // pred_check
      _
    $region27: #{tpu_custom_call.1} parent=1 // pred_check_branch
      %1196 = sbr.rel (0) target = $region29
    $region28: #{tpu_custom_call.1} parent=1 // pred_region
      %1197 = dma.done [#allocation3], 256
    $region29: #{tpu_custom_call.1} parent=1 // pred_fallthru
      _
    %1198 = vsyncpa [#allocation3], 1

</llo_original>
